<compile_context>
chip_gen: v7x
topology: tpu7x:2x2x1
jax: 0.10.0
libtpu: 0.0.40
codegen_flags: <defaults>
</compile_context>

<pallas_src>
import functools

import jax
import jax.numpy as jnp
from jax.experimental import pallas as pl
from jax.experimental.pallas import tpu as pltpu

LN_EPS = 1e-5  # torch.nn.LayerNorm default


def mha_kernel(q_ref, k_ref, v_ref, wq_ref, wk_ref, wv_ref, wo_ref,
               g_ref, beta_ref, o_ref, *, num_head, k_dim):
    # q_ref: (1, tq, D)   k_ref/v_ref: (1, Lk, D)
    # wq/wk/wv: (D, D)    wo: (D, D)   g/beta: (1, D)   o_ref: (1, tq, D)
    xq = q_ref[0]                      # (tq, D) in input dtype
    xk = k_ref[0]                      # (Lk, D)
    xv = v_ref[0]                      # (Lk, D)
    dt = xq.dtype

    # Q/K/V projections: native-dtype operands, f32 accumulation on the MXU.
    qs = jnp.dot(xq, wq_ref[...], preferred_element_type=jnp.float32).astype(dt)
    ks = jnp.dot(xk, wk_ref[...], preferred_element_type=jnp.float32).astype(dt)
    vs = jnp.dot(xv, wv_ref[...], preferred_element_type=jnp.float32).astype(dt)

    wo = wo_ref[...]                   # (D, D), resident in VMEM
    scale = 1.0 / (k_dim ** 0.5)
    tq = xq.shape[0]
    d_model = o_ref.shape[-1]

    # Per-head attention; the output projection is folded into the head loop:
    #   concat_h(a_h) @ Wo == sum_h a_h @ Wo[h*kd:(h+1)*kd, :]
    acc = jnp.zeros((tq, d_model), jnp.float32)
    for h in range(num_head):          # static unroll over heads
        lo = h * k_dim
        qh = qs[:, lo:lo + k_dim]      # (tq, kd)
        kh = ks[:, lo:lo + k_dim]      # (Lk, kd)
        vh = vs[:, lo:lo + k_dim]      # (Lk, kd)

        # scores = qh @ kh^T / sqrt(kd)   (contract on kd, no explicit transpose)
        s = jax.lax.dot_general(qh, kh, (((1,), (1,)), ((), ())),
                                preferred_element_type=jnp.float32) * scale

        # numerically stable softmax over keys (f32)
        s = s - jnp.max(s, axis=-1, keepdims=True)
        p = jnp.exp(s)
        p = p / jnp.sum(p, axis=-1, keepdims=True)

        ah = jnp.dot(p.astype(dt), vh,
                     preferred_element_type=jnp.float32).astype(dt)   # (tq, kd)
        acc = acc + jnp.dot(ah, wo[lo:lo + k_dim, :],
                            preferred_element_type=jnp.float32)       # (tq, D)

    # residual + LayerNorm in f32
    y = acc + xq.astype(jnp.float32)
    mean = jnp.mean(y, axis=-1, keepdims=True)
    var = jnp.mean(jnp.square(y - mean), axis=-1, keepdims=True)
    y = (y - mean) * jax.lax.rsqrt(var + LN_EPS)
    o_ref[0] = (y * g_ref[...].astype(jnp.float32)
                + beta_ref[...].astype(jnp.float32)).astype(o_ref.dtype)


def multi_head_attention(q, k, v, wq, wk, wv, wo, gamma, beta,
                         *, num_head, tq=256):
    """q: (B, Lq, D), k/v: (B, Lk, D).
       Weights stored in (in, out) layout: wq/wk/wv/wo: (D, D); gamma/beta: (D,)."""
    B, Lq, D = q.shape
    _, Lk, _ = k.shape
    assert D % num_head == 0
    kd = D // num_head

    # Query-token tile: as large as possible (up to 256), pad ragged tails.
    tq = min(tq, Lq)
    n_q = pl.cdiv(Lq, tq)
    Lq_pad = n_q * tq
    if Lq_pad != Lq:
        q = jnp.pad(q, ((0, 0), (0, Lq_pad - Lq), (0, 0)))

    gr = gamma.reshape(1, D)
    br = beta.reshape(1, D)

    # Advisory cost estimate so XLA schedules surrounding ops sensibly.
    itemsize = q.dtype.itemsize
    flops = 2 * B * (2 * Lq_pad * D * D            # q proj + out proj
                     + 2 * Lk * D * D              # k, v proj
                     + 2 * num_head * Lq_pad * Lk * kd)  # qk^T + pv
    bytes_accessed = ((q.size + k.size + v.size + B * Lq_pad * D) * itemsize
                      + (wq.size + wk.size + wv.size + wo.size) * wq.dtype.itemsize)
    cost = pl.CostEstimate(flops=flops,
                           transcendentals=B * num_head * Lq_pad * Lk,
                           bytes_accessed=bytes_accessed)

    kernel = functools.partial(mha_kernel, num_head=num_head, k_dim=kd)

    out = pl.pallas_call(
        kernel,
        out_shape=jax.ShapeDtypeStruct((B, Lq_pad, D), q.dtype),
        grid_spec=pltpu.PrefetchScalarGridSpec(
            num_scalar_prefetch=0,
            grid=(B, n_q),
            in_specs=[
                pl.BlockSpec((1, tq, D), lambda b, i: (b, i, 0)),   # q tile
                pl.BlockSpec((1, Lk, D), lambda b, i: (b, 0, 0)),   # k (full seq)
                pl.BlockSpec((1, Lk, D), lambda b, i: (b, 0, 0)),   # v (full seq)
                pl.BlockSpec((D, D), lambda b, i: (0, 0)),          # wq (resident)
                pl.BlockSpec((D, D), lambda b, i: (0, 0)),          # wk (resident)
                pl.BlockSpec((D, D), lambda b, i: (0, 0)),          # wv (resident)
                pl.BlockSpec((D, D), lambda b, i: (0, 0)),          # wo (resident)
                pl.BlockSpec((1, D), lambda b, i: (0, 0)),          # gamma
                pl.BlockSpec((1, D), lambda b, i: (0, 0)),          # beta
            ],
            out_specs=pl.BlockSpec((1, tq, D), lambda b, i: (b, i, 0)),
        ),
        compiler_params=pltpu.CompilerParams(
            dimension_semantics=("parallel", "parallel")),
        cost_estimate=cost,
    )(q, k, v, wq, wk, wv, wo, gr, br)

    if Lq_pad != Lq:
        out = out[:, :Lq, :]
    return out


def reference(q, k, v, wq, wk, wv, wo, gamma, beta, num_head):
    hi = jax.lax.Precision.HIGHEST
    B, Lq, D = q.shape
    Lk = k.shape[1]
    kd = D // num_head
    qs = jnp.einsum("bqd,de->bqe", q, wq, precision=hi)
    ks = jnp.einsum("bkd,de->bke", k, wk, precision=hi)
    vs = jnp.einsum("bkd,de->bke", v, wv, precision=hi)
    qs = qs.reshape(B, Lq, num_head, kd).transpose(0, 2, 1, 3)
    ks = ks.reshape(B, Lk, num_head, kd).transpose(0, 2, 1, 3)
    vs = vs.reshape(B, Lk, num_head, kd).transpose(0, 2, 1, 3)
    s = jnp.einsum("bhqd,bhkd->bhqk", qs, ks, precision=hi) / (kd ** 0.5)
    p = jax.nn.softmax(s, axis=-1)
    a = jnp.einsum("bhqk,bhkd->bhqd", p, vs, precision=hi)
    a = a.transpose(0, 2, 1, 3).reshape(B, Lq, D)
    y = jnp.einsum("bqd,de->bqe", a, wo, precision=hi) + q
    mean = jnp.mean(y, axis=-1, keepdims=True)
    var = jnp.mean(jnp.square(y - mean), axis=-1, keepdims=True)
    return (y - mean) * jax.lax.rsqrt(var + LN_EPS) * gamma + beta


if __name__ == "__main__":
    batch, seq, model_dim, num_head = 2, 8, 32, 4

    key = jax.random.PRNGKey(0)
    kq, kk, kv, k1, k2, k3, k4 = jax.random.split(key, 7)

    q = jax.random.normal(kq, (batch, seq, model_dim), dtype=jnp.float32)
    k = jax.random.normal(kk, (batch, seq, model_dim), dtype=jnp.float32)
    v = jax.random.normal(kv, (batch, seq, model_dim), dtype=jnp.float32)

    # Deterministic synthetic parameters stored in (in, out) layout
    # (so the kernel does x @ W, matching nn.Linear's x @ W^T semantics).
    wq = jax.random.normal(k1, (model_dim, model_dim), dtype=jnp.float32) * 0.1
    wk = jax.random.normal(k2, (model_dim, model_dim), dtype=jnp.float32) * 0.1
    wv = jax.random.normal(k3, (model_dim, model_dim), dtype=jnp.float32) * 0.1
    wo = jax.random.normal(k4, (model_dim, model_dim), dtype=jnp.float32) * 0.1
    gamma = jnp.ones((model_dim,), dtype=jnp.float32)
    beta = jnp.zeros((model_dim,), dtype=jnp.float32)

    out = multi_head_attention(q, k, v, wq, wk, wv, wo, gamma, beta,
                               num_head=num_head)
    out = jax.block_until_ready(out)

    ref = reference(q, k, v, wq, wk, wv, wo, gamma, beta, num_head)
    assert out.shape == (batch, seq, model_dim)
    assert jnp.allclose(out, ref, atol=2e-4, rtol=2e-4), "mismatch vs reference"

    print("KERNEL_OK")
</pallas_src>

<mosaic_0001>
module attributes {stable_mosaic.version = 11 : i64} {
  func.func @mha_kernel(%arg0: i32, %arg1: i32, %arg2: memref<1x8x32xf32, #tpu.memory_space<vmem>>, %arg3: memref<1x8x32xf32, #tpu.memory_space<vmem>>, %arg4: memref<1x8x32xf32, #tpu.memory_space<vmem>>, %arg5: memref<32x32xf32, #tpu.memory_space<vmem>>, %arg6: memref<32x32xf32, #tpu.memory_space<vmem>>, %arg7: memref<32x32xf32, #tpu.memory_space<vmem>>, %arg8: memref<32x32xf32, #tpu.memory_space<vmem>>, %arg9: memref<1x32xf32, #tpu.memory_space<vmem>>, %arg10: memref<1x32xf32, #tpu.memory_space<vmem>>, %arg11: memref<1x8x32xf32, #tpu.memory_space<vmem>>) attributes {dimension_semantics = [#tpu.dimension_semantics<parallel>, #tpu.dimension_semantics<parallel>], iteration_bounds = array<i64: 2, 1>, scalar_prefetch = 0 : i64, scratch_operands = 0 : i64, tpu.core_type = #tpu.core_type<tc>, window_params = [{transform_indices = @transform_0, window_bounds = array<i64: 1, 8, 32>}, {transform_indices = @transform_1, window_bounds = array<i64: 1, 8, 32>}, {transform_indices = @transform_2, window_bounds = array<i64: 1, 8, 32>}, {pipeline_mode = #tpu.pipeline_mode<synchronous>, transform_indices = @transform_3, window_bounds = array<i64: 32, 32>}, {pipeline_mode = #tpu.pipeline_mode<synchronous>, transform_indices = @transform_4, window_bounds = array<i64: 32, 32>}, {pipeline_mode = #tpu.pipeline_mode<synchronous>, transform_indices = @transform_5, window_bounds = array<i64: 32, 32>}, {pipeline_mode = #tpu.pipeline_mode<synchronous>, transform_indices = @transform_6, window_bounds = array<i64: 32, 32>}, {pipeline_mode = #tpu.pipeline_mode<synchronous>, transform_indices = @transform_7, window_bounds = array<i64: 1, 32>}, {pipeline_mode = #tpu.pipeline_mode<synchronous>, transform_indices = @transform_8, window_bounds = array<i64: 1, 32>}, {transform_indices = @transform_9, window_bounds = array<i64: 1, 8, 32>}]} {
    %c0 = arith.constant 0 : index
    %c0_0 = arith.constant 0 : index
    %c0_1 = arith.constant 0 : index
    %0 = vector.load %arg2[%c0, %c0_0, %c0_1] : memref<1x8x32xf32, #tpu.memory_space<vmem>>, vector<1x8x32xf32>
    %1 = vector.shape_cast %0 : vector<1x8x32xf32> to vector<8x32xf32>
    %c0_2 = arith.constant 0 : index
    %c0_3 = arith.constant 0 : index
    %c0_4 = arith.constant 0 : index
    %2 = vector.load %arg3[%c0_2, %c0_3, %c0_4] : memref<1x8x32xf32, #tpu.memory_space<vmem>>, vector<1x8x32xf32>
    %3 = vector.shape_cast %2 : vector<1x8x32xf32> to vector<8x32xf32>
    %c0_5 = arith.constant 0 : index
    %c0_6 = arith.constant 0 : index
    %c0_7 = arith.constant 0 : index
    %4 = vector.load %arg4[%c0_5, %c0_6, %c0_7] : memref<1x8x32xf32, #tpu.memory_space<vmem>>, vector<1x8x32xf32>
    %5 = vector.shape_cast %4 : vector<1x8x32xf32> to vector<8x32xf32>
    %c0_8 = arith.constant 0 : index
    %c0_9 = arith.constant 0 : index
    %6 = vector.load %arg5[%c0_8, %c0_9] : memref<32x32xf32, #tpu.memory_space<vmem>>, vector<32x32xf32>
    %cst = arith.constant dense<0.000000e+00> : vector<8x32xf32>
    %7 = tpu.matmul %1, %6, %cst {dimension_numbers = #tpu.dot_dimension_numbers<[1], [0], [0], [1], [0, 0, 1, 1], [], []>} : vector<8x32xf32>, vector<32x32xf32>, vector<8x32xf32> -> vector<8x32xf32>
    %c0_10 = arith.constant 0 : index
    %c0_11 = arith.constant 0 : index
    %8 = vector.load %arg6[%c0_10, %c0_11] : memref<32x32xf32, #tpu.memory_space<vmem>>, vector<32x32xf32>
    %cst_12 = arith.constant dense<0.000000e+00> : vector<8x32xf32>
    %9 = tpu.matmul %3, %8, %cst_12 {dimension_numbers = #tpu.dot_dimension_numbers<[1], [0], [0], [1], [0, 0, 1, 1], [], []>} : vector<8x32xf32>, vector<32x32xf32>, vector<8x32xf32> -> vector<8x32xf32>
    %c0_13 = arith.constant 0 : index
    %c0_14 = arith.constant 0 : index
    %10 = vector.load %arg7[%c0_13, %c0_14] : memref<32x32xf32, #tpu.memory_space<vmem>>, vector<32x32xf32>
    %cst_15 = arith.constant dense<0.000000e+00> : vector<8x32xf32>
    %11 = tpu.matmul %5, %10, %cst_15 {dimension_numbers = #tpu.dot_dimension_numbers<[1], [0], [0], [1], [0, 0, 1, 1], [], []>} : vector<8x32xf32>, vector<32x32xf32>, vector<8x32xf32> -> vector<8x32xf32>
    %c0_16 = arith.constant 0 : index
    %c0_17 = arith.constant 0 : index
    %12 = vector.load %arg8[%c0_16, %c0_17] : memref<32x32xf32, #tpu.memory_space<vmem>>, vector<32x32xf32>
    %cst_18 = arith.constant 0.000000e+00 : f32
    %13 = vector.broadcast %cst_18 : f32 to vector<8x32xf32>
    %14 = vector.extract_strided_slice %7 {offsets = [0, 0], sizes = [8, 8], strides = [1, 1]} : vector<8x32xf32> to vector<8x8xf32>
    %15 = vector.extract_strided_slice %9 {offsets = [0, 0], sizes = [8, 8], strides = [1, 1]} : vector<8x32xf32> to vector<8x8xf32>
    %16 = vector.extract_strided_slice %11 {offsets = [0, 0], sizes = [8, 8], strides = [1, 1]} : vector<8x32xf32> to vector<8x8xf32>
    %cst_19 = arith.constant dense<0.000000e+00> : vector<8x8xf32>
    %17 = tpu.matmul %14, %15, %cst_19 {dimension_numbers = #tpu.dot_dimension_numbers<[1], [1], [0], [0], [0, 0, 1, 0], [], []>} : vector<8x8xf32>, vector<8x8xf32>, vector<8x8xf32> -> vector<8x8xf32>
    %cst_20 = arith.constant 0.353553385 : f32
    %18 = vector.broadcast %cst_20 : f32 to vector<8x8xf32>
    %19 = arith.mulf %17, %18 : vector<8x8xf32>
    %cst_21 = arith.constant dense<0xFF800000> : vector<8xf32>
    %20 = vector.multi_reduction <maximumf>, %19, %cst_21 [1] : vector<8x8xf32> to vector<8xf32>
    %21 = vector.shape_cast %20 : vector<8xf32> to vector<8x1xf32>
    %22 = vector.broadcast %21 : vector<8x1xf32> to vector<8x8xf32>
    %23 = arith.subf %19, %22 : vector<8x8xf32>
    %24 = math.exp %23 : vector<8x8xf32>
    %cst_22 = arith.constant dense<0.000000e+00> : vector<8xf32>
    %25 = vector.multi_reduction <add>, %24, %cst_22 [1] : vector<8x8xf32> to vector<8xf32>
    %26 = vector.shape_cast %25 : vector<8xf32> to vector<8x1xf32>
    %27 = vector.broadcast %26 : vector<8x1xf32> to vector<8x8xf32>
    %28 = arith.divf %24, %27 : vector<8x8xf32>
    %cst_23 = arith.constant dense<0.000000e+00> : vector<8x8xf32>
    %29 = tpu.matmul %28, %16, %cst_23 {dimension_numbers = #tpu.dot_dimension_numbers<[1], [0], [0], [1], [0, 0, 1, 1], [], []>} : vector<8x8xf32>, vector<8x8xf32>, vector<8x8xf32> -> vector<8x8xf32>
    %30 = vector.extract_strided_slice %12 {offsets = [0, 0], sizes = [8, 32], strides = [1, 1]} : vector<32x32xf32> to vector<8x32xf32>
    %cst_24 = arith.constant dense<0.000000e+00> : vector<8x32xf32>
    %31 = tpu.matmul %29, %30, %cst_24 {dimension_numbers = #tpu.dot_dimension_numbers<[1], [0], [0], [1], [0, 0, 1, 1], [], []>} : vector<8x8xf32>, vector<8x32xf32>, vector<8x32xf32> -> vector<8x32xf32>
    %32 = arith.addf %13, %31 : vector<8x32xf32>
    %33 = vector.extract_strided_slice %7 {offsets = [0, 8], sizes = [8, 8], strides = [1, 1]} : vector<8x32xf32> to vector<8x8xf32>
    %34 = vector.extract_strided_slice %9 {offsets = [0, 8], sizes = [8, 8], strides = [1, 1]} : vector<8x32xf32> to vector<8x8xf32>
    %35 = vector.extract_strided_slice %11 {offsets = [0, 8], sizes = [8, 8], strides = [1, 1]} : vector<8x32xf32> to vector<8x8xf32>
    %cst_25 = arith.constant dense<0.000000e+00> : vector<8x8xf32>
    %36 = tpu.matmul %33, %34, %cst_25 {dimension_numbers = #tpu.dot_dimension_numbers<[1], [1], [0], [0], [0, 0, 1, 0], [], []>} : vector<8x8xf32>, vector<8x8xf32>, vector<8x8xf32> -> vector<8x8xf32>
    %cst_26 = arith.constant 0.353553385 : f32
    %37 = vector.broadcast %cst_26 : f32 to vector<8x8xf32>
    %38 = arith.mulf %36, %37 : vector<8x8xf32>
    %cst_27 = arith.constant dense<0xFF800000> : vector<8xf32>
    %39 = vector.multi_reduction <maximumf>, %38, %cst_27 [1] : vector<8x8xf32> to vector<8xf32>
    %40 = vector.shape_cast %39 : vector<8xf32> to vector<8x1xf32>
    %41 = vector.broadcast %40 : vector<8x1xf32> to vector<8x8xf32>
    %42 = arith.subf %38, %41 : vector<8x8xf32>
    %43 = math.exp %42 : vector<8x8xf32>
    %cst_28 = arith.constant dense<0.000000e+00> : vector<8xf32>
    %44 = vector.multi_reduction <add>, %43, %cst_28 [1] : vector<8x8xf32> to vector<8xf32>
    %45 = vector.shape_cast %44 : vector<8xf32> to vector<8x1xf32>
    %46 = vector.broadcast %45 : vector<8x1xf32> to vector<8x8xf32>
    %47 = arith.divf %43, %46 : vector<8x8xf32>
    %cst_29 = arith.constant dense<0.000000e+00> : vector<8x8xf32>
    %48 = tpu.matmul %47, %35, %cst_29 {dimension_numbers = #tpu.dot_dimension_numbers<[1], [0], [0], [1], [0, 0, 1, 1], [], []>} : vector<8x8xf32>, vector<8x8xf32>, vector<8x8xf32> -> vector<8x8xf32>
    %49 = vector.extract_strided_slice %12 {offsets = [8, 0], sizes = [8, 32], strides = [1, 1]} : vector<32x32xf32> to vector<8x32xf32>
    %cst_30 = arith.constant dense<0.000000e+00> : vector<8x32xf32>
    %50 = tpu.matmul %48, %49, %cst_30 {dimension_numbers = #tpu.dot_dimension_numbers<[1], [0], [0], [1], [0, 0, 1, 1], [], []>} : vector<8x8xf32>, vector<8x32xf32>, vector<8x32xf32> -> vector<8x32xf32>
    %51 = arith.addf %32, %50 : vector<8x32xf32>
    %52 = vector.extract_strided_slice %7 {offsets = [0, 16], sizes = [8, 8], strides = [1, 1]} : vector<8x32xf32> to vector<8x8xf32>
    %53 = vector.extract_strided_slice %9 {offsets = [0, 16], sizes = [8, 8], strides = [1, 1]} : vector<8x32xf32> to vector<8x8xf32>
    %54 = vector.extract_strided_slice %11 {offsets = [0, 16], sizes = [8, 8], strides = [1, 1]} : vector<8x32xf32> to vector<8x8xf32>
    %cst_31 = arith.constant dense<0.000000e+00> : vector<8x8xf32>
    %55 = tpu.matmul %52, %53, %cst_31 {dimension_numbers = #tpu.dot_dimension_numbers<[1], [1], [0], [0], [0, 0, 1, 0], [], []>} : vector<8x8xf32>, vector<8x8xf32>, vector<8x8xf32> -> vector<8x8xf32>
    %cst_32 = arith.constant 0.353553385 : f32
    %56 = vector.broadcast %cst_32 : f32 to vector<8x8xf32>
    %57 = arith.mulf %55, %56 : vector<8x8xf32>
    %cst_33 = arith.constant dense<0xFF800000> : vector<8xf32>
    %58 = vector.multi_reduction <maximumf>, %57, %cst_33 [1] : vector<8x8xf32> to vector<8xf32>
    %59 = vector.shape_cast %58 : vector<8xf32> to vector<8x1xf32>
    %60 = vector.broadcast %59 : vector<8x1xf32> to vector<8x8xf32>
    %61 = arith.subf %57, %60 : vector<8x8xf32>
    %62 = math.exp %61 : vector<8x8xf32>
    %cst_34 = arith.constant dense<0.000000e+00> : vector<8xf32>
    %63 = vector.multi_reduction <add>, %62, %cst_34 [1] : vector<8x8xf32> to vector<8xf32>
    %64 = vector.shape_cast %63 : vector<8xf32> to vector<8x1xf32>
    %65 = vector.broadcast %64 : vector<8x1xf32> to vector<8x8xf32>
    %66 = arith.divf %62, %65 : vector<8x8xf32>
    %cst_35 = arith.constant dense<0.000000e+00> : vector<8x8xf32>
    %67 = tpu.matmul %66, %54, %cst_35 {dimension_numbers = #tpu.dot_dimension_numbers<[1], [0], [0], [1], [0, 0, 1, 1], [], []>} : vector<8x8xf32>, vector<8x8xf32>, vector<8x8xf32> -> vector<8x8xf32>
    %68 = vector.extract_strided_slice %12 {offsets = [16, 0], sizes = [8, 32], strides = [1, 1]} : vector<32x32xf32> to vector<8x32xf32>
    %cst_36 = arith.constant dense<0.000000e+00> : vector<8x32xf32>
    %69 = tpu.matmul %67, %68, %cst_36 {dimension_numbers = #tpu.dot_dimension_numbers<[1], [0], [0], [1], [0, 0, 1, 1], [], []>} : vector<8x8xf32>, vector<8x32xf32>, vector<8x32xf32> -> vector<8x32xf32>
    %70 = arith.addf %51, %69 : vector<8x32xf32>
    %71 = vector.extract_strided_slice %7 {offsets = [0, 24], sizes = [8, 8], strides = [1, 1]} : vector<8x32xf32> to vector<8x8xf32>
    %72 = vector.extract_strided_slice %9 {offsets = [0, 24], sizes = [8, 8], strides = [1, 1]} : vector<8x32xf32> to vector<8x8xf32>
    %73 = vector.extract_strided_slice %11 {offsets = [0, 24], sizes = [8, 8], strides = [1, 1]} : vector<8x32xf32> to vector<8x8xf32>
    %cst_37 = arith.constant dense<0.000000e+00> : vector<8x8xf32>
    %74 = tpu.matmul %71, %72, %cst_37 {dimension_numbers = #tpu.dot_dimension_numbers<[1], [1], [0], [0], [0, 0, 1, 0], [], []>} : vector<8x8xf32>, vector<8x8xf32>, vector<8x8xf32> -> vector<8x8xf32>
    %cst_38 = arith.constant 0.353553385 : f32
    %75 = vector.broadcast %cst_38 : f32 to vector<8x8xf32>
    %76 = arith.mulf %74, %75 : vector<8x8xf32>
    %cst_39 = arith.constant dense<0xFF800000> : vector<8xf32>
    %77 = vector.multi_reduction <maximumf>, %76, %cst_39 [1] : vector<8x8xf32> to vector<8xf32>
    %78 = vector.shape_cast %77 : vector<8xf32> to vector<8x1xf32>
    %79 = vector.broadcast %78 : vector<8x1xf32> to vector<8x8xf32>
    %80 = arith.subf %76, %79 : vector<8x8xf32>
    %81 = math.exp %80 : vector<8x8xf32>
    %cst_40 = arith.constant dense<0.000000e+00> : vector<8xf32>
    %82 = vector.multi_reduction <add>, %81, %cst_40 [1] : vector<8x8xf32> to vector<8xf32>
    %83 = vector.shape_cast %82 : vector<8xf32> to vector<8x1xf32>
    %84 = vector.broadcast %83 : vector<8x1xf32> to vector<8x8xf32>
    %85 = arith.divf %81, %84 : vector<8x8xf32>
    %cst_41 = arith.constant dense<0.000000e+00> : vector<8x8xf32>
    %86 = tpu.matmul %85, %73, %cst_41 {dimension_numbers = #tpu.dot_dimension_numbers<[1], [0], [0], [1], [0, 0, 1, 1], [], []>} : vector<8x8xf32>, vector<8x8xf32>, vector<8x8xf32> -> vector<8x8xf32>
    %87 = vector.extract_strided_slice %12 {offsets = [24, 0], sizes = [8, 32], strides = [1, 1]} : vector<32x32xf32> to vector<8x32xf32>
    %cst_42 = arith.constant dense<0.000000e+00> : vector<8x32xf32>
    %88 = tpu.matmul %86, %87, %cst_42 {dimension_numbers = #tpu.dot_dimension_numbers<[1], [0], [0], [1], [0, 0, 1, 1], [], []>} : vector<8x8xf32>, vector<8x32xf32>, vector<8x32xf32> -> vector<8x32xf32>
    %89 = arith.addf %70, %88 : vector<8x32xf32>
    %90 = arith.addf %89, %1 : vector<8x32xf32>
    %cst_43 = arith.constant dense<0.000000e+00> : vector<8xf32>
    %91 = vector.multi_reduction <add>, %90, %cst_43 [1] : vector<8x32xf32> to vector<8xf32>
    %92 = vector.shape_cast %91 : vector<8xf32> to vector<8x1xf32>
    %cst_44 = arith.constant 3.200000e+01 : f32
    %93 = vector.broadcast %cst_44 : f32 to vector<8x1xf32>
    %94 = arith.divf %92, %93 : vector<8x1xf32>
    %95 = vector.broadcast %94 : vector<8x1xf32> to vector<8x32xf32>
    %96 = arith.subf %90, %95 : vector<8x32xf32>
    %97 = arith.mulf %96, %96 : vector<8x32xf32>
    %cst_45 = arith.constant dense<0.000000e+00> : vector<8xf32>
    %98 = vector.multi_reduction <add>, %97, %cst_45 [1] : vector<8x32xf32> to vector<8xf32>
    %99 = vector.shape_cast %98 : vector<8xf32> to vector<8x1xf32>
    %cst_46 = arith.constant 3.200000e+01 : f32
    %100 = vector.broadcast %cst_46 : f32 to vector<8x1xf32>
    %101 = arith.divf %99, %100 : vector<8x1xf32>
    %102 = vector.broadcast %94 : vector<8x1xf32> to vector<8x32xf32>
    %103 = arith.subf %90, %102 : vector<8x32xf32>
    %cst_47 = arith.constant 9.99999974E-6 : f32
    %104 = vector.broadcast %cst_47 : f32 to vector<8x1xf32>
    %105 = arith.addf %101, %104 : vector<8x1xf32>
    %106 = math.rsqrt %105 : vector<8x1xf32>
    %107 = vector.broadcast %106 : vector<8x1xf32> to vector<8x32xf32>
    %108 = arith.mulf %103, %107 : vector<8x32xf32>
    %c0_48 = arith.constant 0 : index
    %c0_49 = arith.constant 0 : index
    %109 = vector.load %arg9[%c0_48, %c0_49] : memref<1x32xf32, #tpu.memory_space<vmem>>, vector<1x32xf32>
    %110 = vector.broadcast %109 : vector<1x32xf32> to vector<8x32xf32>
    %111 = arith.mulf %108, %110 : vector<8x32xf32>
    %c0_50 = arith.constant 0 : index
    %c0_51 = arith.constant 0 : index
    %112 = vector.load %arg10[%c0_50, %c0_51] : memref<1x32xf32, #tpu.memory_space<vmem>>, vector<1x32xf32>
    %113 = vector.broadcast %112 : vector<1x32xf32> to vector<8x32xf32>
    %114 = arith.addf %111, %113 : vector<8x32xf32>
    %c0_52 = arith.constant 0 : index
    %c0_53 = arith.constant 0 : index
    %c0_54 = arith.constant 0 : index
    %115 = vector.load %arg11[%c0_52, %c0_53, %c0_54] : memref<1x8x32xf32, #tpu.memory_space<vmem>>, vector<1x8x32xf32>
    %116 = vector.shape_cast %115 : vector<1x8x32xf32> to vector<8x32xf32>
    %117 = vector.shape_cast %114 : vector<8x32xf32> to vector<1x8x32xf32>
    tpu.vector_store %arg11[%c0_52, %c0_53, %c0_54], %117 {strides = array<i32>} : memref<1x8x32xf32, #tpu.memory_space<vmem>>, vector<1x8x32xf32>,
    return
  }
  func.func @transform_0(%arg0: i32, %arg1: i32) -> (i32, i32, i32) {
    %c0_i32 = arith.constant 0 : i32
    %c0_i32_0 = arith.constant 0 : i32
    return %arg0, %arg1, %c0_i32 : i32, i32, i32
  }
  func.func @transform_1(%arg0: i32, %arg1: i32) -> (i32, i32, i32) {
    %c0_i32 = arith.constant 0 : i32
    %c0_i32_0 = arith.constant 0 : i32
    %c0_i32_1 = arith.constant 0 : i32
    return %arg0, %c0_i32, %c0_i32_0 : i32, i32, i32
  }
  func.func @transform_2(%arg0: i32, %arg1: i32) -> (i32, i32, i32) {
    %c0_i32 = arith.constant 0 : i32
    %c0_i32_0 = arith.constant 0 : i32
    %c0_i32_1 = arith.constant 0 : i32
    return %arg0, %c0_i32, %c0_i32_0 : i32, i32, i32
  }
  func.func @transform_3(%arg0: i32, %arg1: i32) -> (i32, i32) {
    %c0_i32 = arith.constant 0 : i32
    %c0_i32_0 = arith.constant 0 : i32
    %c0_i32_1 = arith.constant 0 : i32
    return %c0_i32, %c0_i32_0 : i32, i32
  }
  func.func @transform_4(%arg0: i32, %arg1: i32) -> (i32, i32) {
    %c0_i32 = arith.constant 0 : i32
    %c0_i32_0 = arith.constant 0 : i32
    %c0_i32_1 = arith.constant 0 : i32
    return %c0_i32, %c0_i32_0 : i32, i32
  }
  func.func @transform_5(%arg0: i32, %arg1: i32) -> (i32, i32) {
    %c0_i32 = arith.constant 0 : i32
    %c0_i32_0 = arith.constant 0 : i32
    %c0_i32_1 = arith.constant 0 : i32
    return %c0_i32, %c0_i32_0 : i32, i32
  }
  func.func @transform_6(%arg0: i32, %arg1: i32) -> (i32, i32) {
    %c0_i32 = arith.constant 0 : i32
    %c0_i32_0 = arith.constant 0 : i32
    %c0_i32_1 = arith.constant 0 : i32
    return %c0_i32, %c0_i32_0 : i32, i32
  }
  func.func @transform_7(%arg0: i32, %arg1: i32) -> (i32, i32) {
    %c0_i32 = arith.constant 0 : i32
    %c0_i32_0 = arith.constant 0 : i32
    %c0_i32_1 = arith.constant 0 : i32
    return %c0_i32, %c0_i32_0 : i32, i32
  }
  func.func @transform_8(%arg0: i32, %arg1: i32) -> (i32, i32) {
    %c0_i32 = arith.constant 0 : i32
    %c0_i32_0 = arith.constant 0 : i32
    %c0_i32_1 = arith.constant 0 : i32
    return %c0_i32, %c0_i32_0 : i32, i32
  }
  func.func @transform_9(%arg0: i32, %arg1: i32) -> (i32, i32, i32) {
    %c0_i32 = arith.constant 0 : i32
    %c0_i32_0 = arith.constant 0 : i32
    return %arg0, %arg1, %c0_i32 : i32, i32, i32
  }
}

</mosaic_0001>

<llo_original>
// kernel: tpu_custom_call.1
$region0: #{tpu_custom_call.1}
  #allocation0 [shape = 'u32[]', space=smem, size = 0x4, offset = 0x4, fixed_abs, tag = 'smem constant byte address 0x4 - core index']
  #allocation1 [shape = 'u32[144,128]{1,0:T(1,128)}', space=vmem, size = 0x12000, scoped, tag = 'internal scratch']
  %s0 = inlined_call_operand.hbm [shape: f32[2,8,32], index: 0, kind: input, shape index: {}]
  %s1 = inlined_call_operand.hbm [shape: f32[2,8,32], index: 1, kind: input, shape index: {}]
  %s2 = inlined_call_operand.hbm [shape: f32[2,8,32], index: 2, kind: input, shape index: {}]
  %s3 = inlined_call_operand.hbm [shape: f32[32,32], index: 3, kind: input, shape index: {}]
  %s4 = inlined_call_operand.hbm [shape: f32[32,32], index: 4, kind: input, shape index: {}]
  %s5 = inlined_call_operand.hbm [shape: f32[32,32], index: 5, kind: input, shape index: {}]
  %s6 = inlined_call_operand.hbm [shape: f32[32,32], index: 6, kind: input, shape index: {}]
  %s7 = inlined_call_operand.vmem [shape: f32[1,32], index: 7, kind: input, shape index: {}]
  %s8 = inlined_call_operand.vmem [shape: f32[1,32], index: 8, kind: input, shape index: {}]
  %s9 = inlined_call_operand.hbm [shape: f32[2,8,32], index: 9, kind: output, shape index: {}]
  %s10 = sld [smem:[#allocation0]]
  $region97: #{tpu_custom_call.1} parent=0
    _
  %s12 = ssub.s32 1, %s10
  %s13 = scalar_select 0, %s12, %s10
  $region1: #{tpu_custom_call.1} parent=0
    #allocation2 [shape = 'u8[8192]{0}', space=vmem, size = 0x2000, scoped, tag = 'input window, operand 0']
    #allocation3 [shape = 's32[2]{0}', space=sflag, size = 0x8, scoped, tag = 'scoped memory for tpu_custom_call.1']
    #allocation4 [shape = 's32[2]{0}', space=sflag, size = 0x8, scoped, tag = 'scoped memory for tpu_custom_call.1']
    #allocation5 [shape = 'u8[8192]{0}', space=vmem, size = 0x2000, scoped, tag = 'input window, operand 1']
    #allocation6 [shape = 's32[2]{0}', space=sflag, size = 0x8, scoped, tag = 'scoped memory for tpu_custom_call.1']
    #allocation7 [shape = 'u8[8192]{0}', space=vmem, size = 0x2000, scoped, tag = 'input window, operand 2']
    #allocation8 [shape = 'u8[16384]{0}', space=vmem, size = 0x4000, scoped, tag = 'input window, operand 3, single buffered']
    #allocation9 [shape = 's32[1]{0}', space=sflag, size = 0x4, scoped, tag = 'scoped memory for tpu_custom_call.1']
    #allocation10 [shape = 'u8[16384]{0}', space=vmem, size = 0x4000, scoped, tag = 'input window, operand 4, single buffered']
    #allocation11 [shape = 'u8[16384]{0}', space=vmem, size = 0x4000, scoped, tag = 'input window, operand 5, single buffered']
    #allocation12 [shape = 's32[1]{0}', space=sflag, size = 0x4, scoped, tag = 'scoped memory for tpu_custom_call.1']
    #allocation13 [shape = 'u8[16384]{0}', space=vmem, size = 0x4000, scoped, tag = 'input window, operand 6, single buffered']
    #allocation14 [shape = 'u8[8192]{0}', space=vmem, size = 0x2000, scoped, tag = 'output window, operand 0']
    %14 = vsyncpa [#allocation3], 0
    %s15 = scalar_lea.sflag [#allocation3], 1
    %16 = vsyncpa %s15, 0
    %17 = vsyncpa [#allocation6], 0
    %s18 = scalar_lea.sflag [#allocation6], 1
    %19 = vsyncpa %s18, 0
    %20 = vsyncpa [#allocation9], 0
    %21 = vsyncpa [#allocation12], 0
    %22 = vsyncpa [#allocation4], 0
    %s23 = scalar_lea.sflag [#allocation4], 1
    %24 = vsyncpa %s23, 0
    loop: start=0, step=1, limit=4
    $region2: #{tpu_custom_call.1} parent=1 // loop_pre_header
      _
    $region3: #{tpu_custom_call.1} parent=1 // loop_header
      %s26 = sphi 0, %s30
      %p27 = scmp.ge.s32.totalorder %s26, 4
      %s33 = sphi 0, %s45
      %s34 = sphi 0, %s41
      %s35 = sphi 0, %s33
      %s36 = sphi 0, %s34
      %s37 = sphi 0, %s35
      %s38 = sphi 0, %s36
      %s50 = sphi 0, %s52
      %s53 = sphi 0, %s50
      %s54 = sphi 0, %s53
      %s70 = sphi 0, %s54
      %s76 = sphi 0, %s78
      %s79 = sphi 0, %s76
      %s80 = sphi 0, %s79
      %s96 = sphi 0, %s80
      %s102 = sphi 0, %s104
      %s105 = sphi 0, %s102
      %s106 = sphi 0, %s105
      %s122 = sphi 0, %s106
      %s126 = sphi 0, %s126
      %s128 = sphi 0, %s126
      %s129 = sphi 0, %s128
      %s143 = sphi 0, %s129
      %s147 = sphi 0, %s147
      %s149 = sphi 0, %s147
      %s150 = sphi 0, %s149
      %s164 = sphi 0, %s150
      %s168 = sphi 0, %s168
      %s170 = sphi 0, %s168
      %s171 = sphi 0, %s170
      %s185 = sphi 0, %s171
      %s189 = sphi 0, %s189
      %s191 = sphi 0, %s189
      %s192 = sphi 0, %s191
      %s206 = sphi 0, %s192
      %s210 = sphi 0, %s210
      %s212 = sphi 0, %s210
      %s213 = sphi 0, %s212
      %s227 = sphi 0, %s213
      %s231 = sphi 0, %s231
      %s233 = sphi 0, %s231
      %s234 = sphi 0, %s233
      %s248 = sphi 0, %s234
      %s256 = sphi 0, %s258
      %s259 = sphi 0, %s256
      %s260 = sphi 0, %s259
      %s276 = sphi 0, %s260
    $region4: #{tpu_custom_call.1} parent=1 // loop_header_branch
      %29 = sbr.rel (%p27) target = $region8
    $region5: #{tpu_custom_call.1} parent=1 // loop_body
      %s31 = ssub.s32 %s26, 1
      %s32 = ssub.s32 %s26, 2
      %s39 = sadd.s32 1, %s34
      %p40 = scmp.ge.s32.totalorder %s39, 1
      %s41 = scalar_select %p40, 0, %s39
      %s42 = sadd.s32 1, %s33
      %s43 = scalar_select %p40, %s42, %s33
      %p44 = scmp.ge.s32.totalorder %s43, 2
      %s45 = scalar_select %p44, 0, %s43
      %s46 = ssub.s32 %s33, %s45
      %s47 = ssub.s32 %s34, %s41
      %s48 = sor.u32 %s46, %s47
      %p49 = scmp.eq.s32.totalorder %s48, 0
      %s51 = sadd.s32 %s50, 1
      %s52 = scalar_select %p49, %s50, %s51
      %p55 = pneg %p49
      %p56 = scmp.eq.s32.totalorder %s26, 1
      %p57 = por %p55, %p56
      %p58 = scmp.ne.s32.totalorder %s50, %s53
      %p59 = scmp.eq.s32.totalorder %s26, 0
      %p60 = por %p58, %p59
      %p61 = scmp.ne.s32.totalorder %s50, %s53
      %p62 = scmp.eq.s32.totalorder %s31, 1
      %p63 = por %p61, %p62
      %p64 = scmp.ne.s32.totalorder %s53, %s54
      %p65 = scmp.eq.s32.totalorder %s31, 0
      %p66 = por %p64, %p65
      %p67 = scmp.ne.s32.totalorder %s53, %s54
      %p68 = scmp.eq.s32.totalorder %s32, 1
      %p69 = por %p67, %p68
      %p71 = scmp.ne.s32.totalorder %s54, %s70
      %p72 = scmp.eq.s32.totalorder %s32, 0
      %p73 = por %p71, %p72
      %s74 = ssub.s32 %s33, %s45
      %p75 = scmp.eq.s32.totalorder %s74, 0
      %s77 = sadd.s32 %s76, 1
      %s78 = scalar_select %p75, %s76, %s77
      %p81 = pneg %p75
      %p82 = scmp.eq.s32.totalorder %s26, 1
      %p83 = por %p81, %p82
      %p84 = scmp.ne.s32.totalorder %s76, %s79
      %p85 = scmp.eq.s32.totalorder %s26, 0
      %p86 = por %p84, %p85
      %p87 = scmp.ne.s32.totalorder %s76, %s79
      %p88 = scmp.eq.s32.totalorder %s31, 1
      %p89 = por %p87, %p88
      %p90 = scmp.ne.s32.totalorder %s79, %s80
      %p91 = scmp.eq.s32.totalorder %s31, 0
      %p92 = por %p90, %p91
      %p93 = scmp.ne.s32.totalorder %s79, %s80
      %p94 = scmp.eq.s32.totalorder %s32, 1
      %p95 = por %p93, %p94
      %p97 = scmp.ne.s32.totalorder %s80, %s96
      %p98 = scmp.eq.s32.totalorder %s32, 0
      %p99 = por %p97, %p98
      %s100 = ssub.s32 %s33, %s45
      %p101 = scmp.eq.s32.totalorder %s100, 0
      %s103 = sadd.s32 %s102, 1
      %s104 = scalar_select %p101, %s102, %s103
      %p107 = pneg %p101
      %p108 = scmp.eq.s32.totalorder %s26, 1
      %p109 = por %p107, %p108
      %p110 = scmp.ne.s32.totalorder %s102, %s105
      %p111 = scmp.eq.s32.totalorder %s26, 0
      %p112 = por %p110, %p111
      %p113 = scmp.ne.s32.totalorder %s102, %s105
      %p114 = scmp.eq.s32.totalorder %s31, 1
      %p115 = por %p113, %p114
      %p116 = scmp.ne.s32.totalorder %s105, %s106
      %p117 = scmp.eq.s32.totalorder %s31, 0
      %p118 = por %p116, %p117
      %p119 = scmp.ne.s32.totalorder %s105, %s106
      %p120 = scmp.eq.s32.totalorder %s32, 1
      %p121 = por %p119, %p120
      %p123 = scmp.ne.s32.totalorder %s106, %s122
      %p124 = scmp.eq.s32.totalorder %s32, 0
      %p125 = por %p123, %p124
      %s127 = sadd.s32 %s126, 1
      %p130 = scmp.eq.s32.totalorder %s26, 1
      %p131 = scmp.ne.s32.totalorder %s126, %s128
      %p132 = scmp.eq.s32.totalorder %s26, 0
      %p133 = por %p131, %p132
      %p134 = scmp.ne.s32.totalorder %s126, %s128
      %p135 = scmp.eq.s32.totalorder %s31, 1
      %p136 = por %p134, %p135
      %p137 = scmp.ne.s32.totalorder %s128, %s129
      %p138 = scmp.eq.s32.totalorder %s31, 0
      %p139 = por %p137, %p138
      %p140 = scmp.ne.s32.totalorder %s128, %s129
      %p141 = scmp.eq.s32.totalorder %s32, 1
      %p142 = por %p140, %p141
      %p144 = scmp.ne.s32.totalorder %s129, %s143
      %p145 = scmp.eq.s32.totalorder %s32, 0
      %p146 = por %p144, %p145
      %s148 = sadd.s32 %s147, 1
      %p151 = scmp.eq.s32.totalorder %s26, 1
      %p152 = scmp.ne.s32.totalorder %s147, %s149
      %p153 = scmp.eq.s32.totalorder %s26, 0
      %p154 = por %p152, %p153
      %p155 = scmp.ne.s32.totalorder %s147, %s149
      %p156 = scmp.eq.s32.totalorder %s31, 1
      %p157 = por %p155, %p156
      %p158 = scmp.ne.s32.totalorder %s149, %s150
      %p159 = scmp.eq.s32.totalorder %s31, 0
      %p160 = por %p158, %p159
      %p161 = scmp.ne.s32.totalorder %s149, %s150
      %p162 = scmp.eq.s32.totalorder %s32, 1
      %p163 = por %p161, %p162
      %p165 = scmp.ne.s32.totalorder %s150, %s164
      %p166 = scmp.eq.s32.totalorder %s32, 0
      %p167 = por %p165, %p166
      %s169 = sadd.s32 %s168, 1
      %p172 = scmp.eq.s32.totalorder %s26, 1
      %p173 = scmp.ne.s32.totalorder %s168, %s170
      %p174 = scmp.eq.s32.totalorder %s26, 0
      %p175 = por %p173, %p174
      %p176 = scmp.ne.s32.totalorder %s168, %s170
      %p177 = scmp.eq.s32.totalorder %s31, 1
      %p178 = por %p176, %p177
      %p179 = scmp.ne.s32.totalorder %s170, %s171
      %p180 = scmp.eq.s32.totalorder %s31, 0
      %p181 = por %p179, %p180
      %p182 = scmp.ne.s32.totalorder %s170, %s171
      %p183 = scmp.eq.s32.totalorder %s32, 1
      %p184 = por %p182, %p183
      %p186 = scmp.ne.s32.totalorder %s171, %s185
      %p187 = scmp.eq.s32.totalorder %s32, 0
      %p188 = por %p186, %p187
      %s190 = sadd.s32 %s189, 1
      %p193 = scmp.eq.s32.totalorder %s26, 1
      %p194 = scmp.ne.s32.totalorder %s189, %s191
      %p195 = scmp.eq.s32.totalorder %s26, 0
      %p196 = por %p194, %p195
      %p197 = scmp.ne.s32.totalorder %s189, %s191
      %p198 = scmp.eq.s32.totalorder %s31, 1
      %p199 = por %p197, %p198
      %p200 = scmp.ne.s32.totalorder %s191, %s192
      %p201 = scmp.eq.s32.totalorder %s31, 0
      %p202 = por %p200, %p201
      %p203 = scmp.ne.s32.totalorder %s191, %s192
      %p204 = scmp.eq.s32.totalorder %s32, 1
      %p205 = por %p203, %p204
      %p207 = scmp.ne.s32.totalorder %s192, %s206
      %p208 = scmp.eq.s32.totalorder %s32, 0
      %p209 = por %p207, %p208
      %s211 = sadd.s32 %s210, 1
      %p214 = scmp.eq.s32.totalorder %s26, 1
      %p215 = scmp.ne.s32.totalorder %s210, %s212
      %p216 = scmp.eq.s32.totalorder %s26, 0
      %p217 = por %p215, %p216
      %p218 = scmp.ne.s32.totalorder %s210, %s212
      %p219 = scmp.eq.s32.totalorder %s31, 1
      %p220 = por %p218, %p219
      %p221 = scmp.ne.s32.totalorder %s212, %s213
      %p222 = scmp.eq.s32.totalorder %s31, 0
      %p223 = por %p221, %p222
      %p224 = scmp.ne.s32.totalorder %s212, %s213
      %p225 = scmp.eq.s32.totalorder %s32, 1
      %p226 = por %p224, %p225
      %p228 = scmp.ne.s32.totalorder %s213, %s227
      %p229 = scmp.eq.s32.totalorder %s32, 0
      %p230 = por %p228, %p229
      %s232 = sadd.s32 %s231, 1
      %p235 = scmp.eq.s32.totalorder %s26, 1
      %p236 = scmp.ne.s32.totalorder %s231, %s233
      %p237 = scmp.eq.s32.totalorder %s26, 0
      %p238 = por %p236, %p237
      %p239 = scmp.ne.s32.totalorder %s231, %s233
      %p240 = scmp.eq.s32.totalorder %s31, 1
      %p241 = por %p239, %p240
      %p242 = scmp.ne.s32.totalorder %s233, %s234
      %p243 = scmp.eq.s32.totalorder %s31, 0
      %p244 = por %p242, %p243
      %p245 = scmp.ne.s32.totalorder %s233, %s234
      %p246 = scmp.eq.s32.totalorder %s32, 1
      %p247 = por %p245, %p246
      %p249 = scmp.ne.s32.totalorder %s234, %s248
      %p250 = scmp.eq.s32.totalorder %s32, 0
      %p251 = por %p249, %p250
      %s252 = ssub.s32 %s33, %s45
      %s253 = ssub.s32 %s34, %s41
      %s254 = sor.u32 %s252, %s253
      %p255 = scmp.eq.s32.totalorder %s254, 0
      %s257 = sadd.s32 %s256, 1
      %s258 = scalar_select %p255, %s256, %s257
      %p261 = pneg %p255
      %p262 = scmp.eq.s32.totalorder %s26, 1
      %p263 = por %p261, %p262
      %p264 = scmp.ne.s32.totalorder %s256, %s259
      %p265 = scmp.eq.s32.totalorder %s26, 0
      %p266 = por %p264, %p265
      %p267 = scmp.ne.s32.totalorder %s256, %s259
      %p268 = scmp.eq.s32.totalorder %s31, 1
      %p269 = por %p267, %p268
      %p270 = scmp.ne.s32.totalorder %s259, %s260
      %p271 = scmp.eq.s32.totalorder %s31, 0
      %p272 = por %p270, %p271
      %p273 = scmp.ne.s32.totalorder %s259, %s260
      %p274 = scmp.eq.s32.totalorder %s32, 1
      %p275 = por %p273, %p274
      %p277 = scmp.ne.s32.totalorder %s260, %s276
      %p278 = scmp.eq.s32.totalorder %s32, 0
      %p279 = por %p277, %p278
      %p280 = scmp.le.s32.totalorder 1, %s26
      %p281 = scmp.lt.s32.totalorder %s26, 3
      %p282 = pnand %p280, %p281
      %p283 = pneg %p282
      // Predicated region
      $region9: #{tpu_custom_call.1} parent=5 // pred_check
        _
      $region10: #{tpu_custom_call.1} parent=5 // pred_check_branch
        %285 = sbr.rel (%p282) target = $region12
      $region11: #{tpu_custom_call.1} parent=5 // pred_region
        %s286 = ssub.s32 %s26, 1
        // Predicated region
        $region13: #{tpu_custom_call.1} parent=11 // pred_check
          %p287 = pneg %p139
        $region14: #{tpu_custom_call.1} parent=11 // pred_check_branch
          %289 = sbr.rel (%p287) target = $region16
        $region15: #{tpu_custom_call.1} parent=11 // pred_region
          %s291 = ssub.s32 512, 512
          %292 = vsyncadd [#allocation9], %s291
          %s293 = sshll.u32 [#allocation8], 4
          %s294 = int_to_ptr.vmem [resolvable:$true] %s293
          %299 = dma.hbm_to_vmem [thread:$0]  %s3, 512, %s294, [#allocation9], 128, 128, 8
        $region16: #{tpu_custom_call.1} parent=11 // pred_fallthru
          _
        // Predicated region
        $region17: #{tpu_custom_call.1} parent=11 // pred_check
          %p300 = pneg %p160
        $region18: #{tpu_custom_call.1} parent=11 // pred_check_branch
          %302 = sbr.rel (%p300) target = $region20
        $region19: #{tpu_custom_call.1} parent=11 // pred_region
          %s304 = ssub.s32 512, 512
          %305 = vsyncadd [#allocation9], %s304
          %s306 = sshll.u32 [#allocation10], 4
          %s307 = int_to_ptr.vmem [resolvable:$true] %s306
          %312 = dma.hbm_to_vmem [thread:$0]  %s4, 512, %s307, [#allocation9], 128, 128, 8
        $region20: #{tpu_custom_call.1} parent=11 // pred_fallthru
          _
        // Predicated region
        $region21: #{tpu_custom_call.1} parent=11 // pred_check
          %p313 = pneg %p181
        $region22: #{tpu_custom_call.1} parent=11 // pred_check_branch
          %315 = sbr.rel (%p313) target = $region24
        $region23: #{tpu_custom_call.1} parent=11 // pred_region
          %s317 = ssub.s32 512, 512
          %318 = vsyncadd [#allocation12], %s317
          %s319 = sshll.u32 [#allocation11], 4
          %s320 = int_to_ptr.vmem [resolvable:$true] %s319
          %325 = dma.hbm_to_vmem [thread:$0]  %s5, 512, %s320, [#allocation12], 128, 128, 8
        $region24: #{tpu_custom_call.1} parent=11 // pred_fallthru
          _
        // Predicated region
        $region25: #{tpu_custom_call.1} parent=11 // pred_check
          %p326 = pneg %p202
        $region26: #{tpu_custom_call.1} parent=11 // pred_check_branch
          %328 = sbr.rel (%p326) target = $region28
        $region27: #{tpu_custom_call.1} parent=11 // pred_region
          %s330 = ssub.s32 512, 512
          %331 = vsyncadd [#allocation12], %s330
          %s332 = sshll.u32 [#allocation13], 4
          %s333 = int_to_ptr.vmem [resolvable:$true] %s332
          %338 = dma.hbm_to_vmem [thread:$0]  %s6, 512, %s333, [#allocation12], 128, 128, 8
        $region28: #{tpu_custom_call.1} parent=11 // pred_fallthru
          _
        // Predicated region
        $region29: #{tpu_custom_call.1} parent=11 // pred_check
          %p339 = pneg %p223
        $region30: #{tpu_custom_call.1} parent=11 // pred_check_branch
          %341 = sbr.rel (%p339) target = $region32
        $region31: #{tpu_custom_call.1} parent=11 // pred_region
          _
        $region32: #{tpu_custom_call.1} parent=11 // pred_fallthru
          _
        // Predicated region
        $region33: #{tpu_custom_call.1} parent=11 // pred_check
          %p342 = pneg %p244
        $region34: #{tpu_custom_call.1} parent=11 // pred_check_branch
          %344 = sbr.rel (%p342) target = $region36
        $region35: #{tpu_custom_call.1} parent=11 // pred_region
          _
        $region36: #{tpu_custom_call.1} parent=11 // pred_fallthru
          _
      $region12: #{tpu_custom_call.1} parent=5 // pred_fallthru
        _
      %p345 = scmp.lt.s32.totalorder %s26, 2
      // Predicated region
      $region37: #{tpu_custom_call.1} parent=5 // pred_check
        %p346 = pneg %p345
      $region38: #{tpu_custom_call.1} parent=5 // pred_check_branch
        %348 = sbr.rel (%p346) target = $region40
      $region39: #{tpu_custom_call.1} parent=5 // pred_region
        // Predicated region
        $region41: #{tpu_custom_call.1} parent=39 // pred_check
          %p349 = pneg %p60
        $region42: #{tpu_custom_call.1} parent=39 // pred_check_branch
          %351 = sbr.rel (%p349) target = $region44
        $region43: #{tpu_custom_call.1} parent=39 // pred_region
          %s352 = sand.u32 %s50, 1
          %s353 = scalar_lea.sflag [#allocation3], %s352
          %s354 = sand.u32 %s50, 1
          %s355 = smul.addr %s354, 8
          %s356 = scalar_lea.vmem [#allocation2], %s355
          %s358 = ssub.s32 128, 128
          %359 = vsyncadd %s353, %s358
          %s360 = sadd.s32 %s34, %s33
          %s361 = smul.addr %s360, 128
          %s362 = scalar_lea.hbm %s0, %s361
          %s364 = sshll.u32 %s356, 4
          %s365 = int_to_ptr.vmem [resolvable:$true] %s364
          %367 = dma.hbm_to_vmem [thread:$0]  %s362, 128, %s365, %s353
        $region44: #{tpu_custom_call.1} parent=39 // pred_fallthru
          _
        // Predicated region
        $region45: #{tpu_custom_call.1} parent=39 // pred_check
          %p368 = pneg %p86
        $region46: #{tpu_custom_call.1} parent=39 // pred_check_branch
          %370 = sbr.rel (%p368) target = $region48
        $region47: #{tpu_custom_call.1} parent=39 // pred_region
          %s371 = sand.u32 %s26, 1
          %s372 = scalar_lea.sflag [#allocation6], %s371
          %s373 = sand.u32 %s76, 1
          %s374 = smul.addr %s373, 8
          %s375 = scalar_lea.vmem [#allocation5], %s374
          %s377 = ssub.s32 128, 128
          %378 = vsyncadd %s372, %s377
          %s379 = smul.addr %s33, 128
          %s380 = scalar_lea.hbm %s1, %s379
          %s382 = sshll.u32 %s375, 4
          %s383 = int_to_ptr.vmem [resolvable:$true] %s382
          %385 = dma.hbm_to_vmem [thread:$0]  %s380, 128, %s383, %s372
        $region48: #{tpu_custom_call.1} parent=39 // pred_fallthru
          _
        // Predicated region
        $region49: #{tpu_custom_call.1} parent=39 // pred_check
          %p386 = pneg %p112
        $region50: #{tpu_custom_call.1} parent=39 // pred_check_branch
          %388 = sbr.rel (%p386) target = $region52
        $region51: #{tpu_custom_call.1} parent=39 // pred_region
          %s389 = sand.u32 %s26, 1
          %s390 = scalar_lea.sflag [#allocation6], %s389
          %s391 = sand.u32 %s102, 1
          %s392 = smul.addr %s391, 8
          %s393 = scalar_lea.vmem [#allocation7], %s392
          %s395 = ssub.s32 128, 128
          %396 = vsyncadd %s390, %s395
          %s397 = smul.addr %s33, 128
          %s398 = scalar_lea.hbm %s2, %s397
          %s400 = sshll.u32 %s393, 4
          %s401 = int_to_ptr.vmem [resolvable:$true] %s400
          %403 = dma.hbm_to_vmem [thread:$0]  %s398, 128, %s401, %s390
        $region52: #{tpu_custom_call.1} parent=39 // pred_fallthru
          _
      $region40: #{tpu_custom_call.1} parent=5 // pred_fallthru
        _
      %p404 = scmp.le.s32.totalorder 1, %s26
      %p405 = scmp.lt.s32.totalorder %s26, 3
      %p406 = pnand %p404, %p405
      %p407 = pneg %p406
      // Predicated region
      $region53: #{tpu_custom_call.1} parent=5 // pred_check
        _
      $region54: #{tpu_custom_call.1} parent=5 // pred_check_branch
        %409 = sbr.rel (%p406) target = $region56
      $region55: #{tpu_custom_call.1} parent=5 // pred_region
        %s410 = ssub.s32 %s26, 1
        %s411 = sand.u32 %s53, 1
        %s412 = scalar_lea.sflag [#allocation3], %s411
        %s413 = sand.u32 %s53, 1
        %s414 = smul.addr %s413, 8
        %s415 = scalar_lea.vmem [#allocation2], %s414
        // Predicated region
        $region57: #{tpu_custom_call.1} parent=55 // pred_check
          %p416 = pneg %p66
        $region58: #{tpu_custom_call.1} parent=55 // pred_check_branch
          %418 = sbr.rel (%p416) target = $region60
        $region59: #{tpu_custom_call.1} parent=55 // pred_region
          %419 = dma.done %s412, 128
        $region60: #{tpu_custom_call.1} parent=55 // pred_fallthru
          _
        %s420 = sand.u32 %s31, 1
        %s421 = scalar_lea.sflag [#allocation6], %s420
        %s422 = sand.u32 %s79, 1
        %s423 = smul.addr %s422, 8
        %s424 = scalar_lea.vmem [#allocation5], %s423
        // Predicated region
        $region61: #{tpu_custom_call.1} parent=55 // pred_check
          %p425 = pneg %p92
        $region62: #{tpu_custom_call.1} parent=55 // pred_check_branch
          %427 = sbr.rel (%p425) target = $region64
        $region63: #{tpu_custom_call.1} parent=55 // pred_region
          %428 = dma.done %s421, 128
        $region64: #{tpu_custom_call.1} parent=55 // pred_fallthru
          _
        %s429 = sand.u32 %s31, 1
        %s430 = scalar_lea.sflag [#allocation6], %s429
        %s431 = sand.u32 %s105, 1
        %s432 = smul.addr %s431, 8
        %s433 = scalar_lea.vmem [#allocation7], %s432
        // Predicated region
        $region65: #{tpu_custom_call.1} parent=55 // pred_check
          %p434 = pneg %p118
        $region66: #{tpu_custom_call.1} parent=55 // pred_check_branch
          %436 = sbr.rel (%p434) target = $region68
        $region67: #{tpu_custom_call.1} parent=55 // pred_region
          %437 = dma.done %s430, 128
        $region68: #{tpu_custom_call.1} parent=55 // pred_fallthru
          _
        // Predicated region
        $region69: #{tpu_custom_call.1} parent=55 // pred_check
          %p438 = pneg %p139
        $region70: #{tpu_custom_call.1} parent=55 // pred_check_branch
          %440 = sbr.rel (%p438) target = $region72
        $region71: #{tpu_custom_call.1} parent=55 // pred_region
          %441 = dma.done [#allocation9], 512
        $region72: #{tpu_custom_call.1} parent=55 // pred_fallthru
          _
        // Predicated region
        $region73: #{tpu_custom_call.1} parent=55 // pred_check
          %p442 = pneg %p160
        $region74: #{tpu_custom_call.1} parent=55 // pred_check_branch
          %444 = sbr.rel (%p442) target = $region76
        $region75: #{tpu_custom_call.1} parent=55 // pred_region
          %445 = dma.done [#allocation9], 512
        $region76: #{tpu_custom_call.1} parent=55 // pred_fallthru
          _
        // Predicated region
        $region77: #{tpu_custom_call.1} parent=55 // pred_check
          %p446 = pneg %p181
        $region78: #{tpu_custom_call.1} parent=55 // pred_check_branch
          %448 = sbr.rel (%p446) target = $region80
        $region79: #{tpu_custom_call.1} parent=55 // pred_region
          %449 = dma.done [#allocation12], 512
        $region80: #{tpu_custom_call.1} parent=55 // pred_fallthru
          _
        // Predicated region
        $region81: #{tpu_custom_call.1} parent=55 // pred_check
          %p450 = pneg %p202
        $region82: #{tpu_custom_call.1} parent=55 // pred_check_branch
          %452 = sbr.rel (%p450) target = $region84
        $region83: #{tpu_custom_call.1} parent=55 // pred_region
          %453 = dma.done [#allocation12], 512
        $region84: #{tpu_custom_call.1} parent=55 // pred_fallthru
          _
        %s454 = sand.u32 %s53, 1
        %s455 = scalar_lea.sflag [#allocation3], %s454
        %s456 = sand.u32 %s53, 1
        %s457 = smul.addr %s456, 8
        %s458 = scalar_lea.vmem [#allocation2], %s457
        %p459 = pneg %p66
        %p460 = pneg %p63
        %s461 = sand.u32 %s31, 1
        %s462 = scalar_lea.sflag [#allocation6], %s461
        %s463 = sand.u32 %s79, 1
        %s464 = smul.addr %s463, 8
        %s465 = scalar_lea.vmem [#allocation5], %s464
        %p466 = pneg %p92
        %p467 = pneg %p89
        %s468 = sand.u32 %s31, 1
        %s469 = scalar_lea.sflag [#allocation6], %s468
        %s470 = sand.u32 %s105, 1
        %s471 = smul.addr %s470, 8
        %s472 = scalar_lea.vmem [#allocation7], %s471
        %p473 = pneg %p118
        %p474 = pneg %p115
        %p475 = pneg %p139
        %p476 = pneg %p136
        %p477 = pneg %p160
        %p478 = pneg %p157
        %p479 = pneg %p181
        %p480 = pneg %p178
        %p481 = pneg %p202
        %p482 = pneg %p199
        %p483 = pneg %p223
        %p484 = pneg %p220
        %p485 = pneg %p244
        %p486 = pneg %p241
        %p487 = pneg %p272
        %p488 = pneg %p269
        %s489 = sand.u32 %s259, 1
        %s490 = scalar_lea.sflag [#allocation4], %s489
        %s491 = sand.u32 %s259, 1
        %s492 = smul.addr %s491, 8
        %s493 = scalar_lea.vmem [#allocation14], %s492
        %v494 = vld [vmem:[%s415] sm:$0xff]
        %v495 = vld [vmem:[%s424] sm:$0xff]
        %v496 = vld [vmem:[%s433] sm:$0xff]
        %v497 = vld [vmem:[#allocation8] sm:$0xff]
        %v498 = vld [vmem:[#allocation8 + $0x8] sm:$0xff]
        %v499 = vld [vmem:[#allocation8 + $0x10] sm:$0xff]
        %v500 = vld [vmem:[#allocation8 + $0x18] sm:$0xff]
        %vm501 = vcmask 261120
        %v503 = vsel %vm501, %v494, 0
        %505 = vmatprep.subr.mxu0 0.0
        %506 = vmatpush1.msra.mxu0 %v497
        %507 = vmatprep.subr.mxu0 0.0
        %508 = vmatpush1.msra.mxu0 %v498
        %509 = vmatprep.subr.mxu0 0.0
        %510 = vmatpush1.msra.mxu0 %v499
        %511 = vmatprep.subr.mxu0 0.0
        %512 = vmatpush1.msra.mxu0 %v500
        %513 = vmatprep.subr.mxu0 0.0
        %514 = vmatpush1.msra.mxu0 0.0
        %515 = vmatprep.subr.mxu0 0.0
        %516 = vmatpush1.msra.mxu0 0.0
        %517 = vmatprep.subr.mxu0 0.0
        %518 = vmatpush1.msra.mxu0 0.0
        %519 = vmatprep.subr.mxu0 0.0
        %520 = vmatpush1.msra.mxu0 0.0
        %521 = vmatprep.subr.mxu0 0.0
        %522 = vmatpush1.msra.mxu0 0.0
        %523 = vmatprep.subr.mxu0 0.0
        %524 = vmatpush1.msra.mxu0 0.0
        %525 = vmatprep.subr.mxu0 0.0
        %526 = vmatpush1.msra.mxu0 0.0
        %527 = vmatprep.subr.mxu0 0.0
        %528 = vmatpush1.msra.mxu0 0.0
        %529 = vmatprep.subr.mxu0 0.0
        %530 = vmatpush1.msra.mxu0 0.0
        %531 = vmatprep.subr.mxu0 0.0
        %532 = vmatpush1.msra.mxu0 0.0
        %533 = vmatprep.subr.mxu0 0.0
        %534 = vmatpush1.msra.mxu0 0.0
        %535 = vmatprep.subr.mxu0 0.0
        %536 = vmatpush1.msra.mxu0 0.0
        %537 = vmatprep.subr.mxu0 0.0
        %538 = vmatpush1.msra.mxu0 0.0
        %539 = vmatprep.subr.mxu0 0.0
        %540 = vmatpush1.msra.mxu0 0.0
        %541 = vmatprep.subr.mxu0 0.0
        %542 = vmatpush1.msra.mxu0 0.0
        %543 = vmatprep.subr.mxu0 0.0
        %544 = vmatpush1.msra.mxu0 0.0
        %545 = vmatprep.subr.mxu0 0.0
        %546 = vmatpush1.msra.mxu0 0.0
        %547 = vmatprep.subr.mxu0 0.0
        %548 = vmatpush1.msra.mxu0 0.0
        %549 = vmatprep.subr.mxu0 0.0
        %550 = vmatpush1.msra.mxu0 0.0
        %551 = vmatprep.subr.mxu0 0.0
        %552 = vmatpush1.msra.mxu0 0.0
        %553 = vmatprep.subr.mxu0 0.0
        %554 = vmatpush1.msra.mxu0 0.0
        %555 = vmatprep.subr.mxu0 0.0
        %556 = vmatpush1.msra.mxu0 0.0
        %557 = vmatprep.subr.mxu0 0.0
        %558 = vmatpush1.msra.mxu0 0.0
        %559 = vmatprep.subr.mxu0 0.0
        %560 = vmatpush1.msra.mxu0 0.0
        %561 = vmatprep.subr.mxu0 0.0
        %562 = vmatpush1.msra.mxu0 0.0
        %563 = vmatprep.subr.mxu0 0.0
        %564 = vmatpush1.msra.mxu0 0.0
        %565 = vmatprep.subr.mxu0 0.0
        %566 = vmatpush1.msra.mxu0 0.0
        %567 = vmatprep.subr.mxu0 0.0
        %568 = vmatpush1.msra.mxu0 0.0
        %569 = vmatprep.mubr.f32.mxu0 0.0
        %570 = vmatmul.mubr.f32.gmra.mrb[0].mxu0 %v503
        %v571 = vpop.f32.mrb[0].mxu0
        %v572 = vadd.f32 0.0, %v571
        %v573 = vpop.f32.mrb[0].mxu0
        %574 = vdwg.mxu0
        %v575 = vld [vmem:[#allocation10] sm:$0xff]
        %v576 = vld [vmem:[#allocation10 + $0x8] sm:$0xff]
        %v577 = vld [vmem:[#allocation10 + $0x10] sm:$0xff]
        %v578 = vld [vmem:[#allocation10 + $0x18] sm:$0xff]
        %v580 = vsel %vm501, %v495, 0
        %582 = vmatprep.subr.mxu0 0.0
        %583 = vmatpush1.msra.mxu0 %v575
        %584 = vmatprep.subr.mxu0 0.0
        %585 = vmatpush1.msra.mxu0 %v576
        %586 = vmatprep.subr.mxu0 0.0
        %587 = vmatpush1.msra.mxu0 %v577
        %588 = vmatprep.subr.mxu0 0.0
        %589 = vmatpush1.msra.mxu0 %v578
        %590 = vmatprep.subr.mxu0 0.0
        %591 = vmatpush1.msra.mxu0 0.0
        %592 = vmatprep.subr.mxu0 0.0
        %593 = vmatpush1.msra.mxu0 0.0
        %594 = vmatprep.subr.mxu0 0.0
        %595 = vmatpush1.msra.mxu0 0.0
        %596 = vmatprep.subr.mxu0 0.0
        %597 = vmatpush1.msra.mxu0 0.0
        %598 = vmatprep.subr.mxu0 0.0
        %599 = vmatpush1.msra.mxu0 0.0
        %600 = vmatprep.subr.mxu0 0.0
        %601 = vmatpush1.msra.mxu0 0.0
        %602 = vmatprep.subr.mxu0 0.0
        %603 = vmatpush1.msra.mxu0 0.0
        %604 = vmatprep.subr.mxu0 0.0
        %605 = vmatpush1.msra.mxu0 0.0
        %606 = vmatprep.subr.mxu0 0.0
        %607 = vmatpush1.msra.mxu0 0.0
        %608 = vmatprep.subr.mxu0 0.0
        %609 = vmatpush1.msra.mxu0 0.0
        %610 = vmatprep.subr.mxu0 0.0
        %611 = vmatpush1.msra.mxu0 0.0
        %612 = vmatprep.subr.mxu0 0.0
        %613 = vmatpush1.msra.mxu0 0.0
        %614 = vmatprep.subr.mxu0 0.0
        %615 = vmatpush1.msra.mxu0 0.0
        %616 = vmatprep.subr.mxu0 0.0
        %617 = vmatpush1.msra.mxu0 0.0
        %618 = vmatprep.subr.mxu0 0.0
        %619 = vmatpush1.msra.mxu0 0.0
        %620 = vmatprep.subr.mxu0 0.0
        %621 = vmatpush1.msra.mxu0 0.0
        %622 = vmatprep.subr.mxu0 0.0
        %623 = vmatpush1.msra.mxu0 0.0
        %624 = vmatprep.subr.mxu0 0.0
        %625 = vmatpush1.msra.mxu0 0.0
        %626 = vmatprep.subr.mxu0 0.0
        %627 = vmatpush1.msra.mxu0 0.0
        %628 = vmatprep.subr.mxu0 0.0
        %629 = vmatpush1.msra.mxu0 0.0
        %630 = vmatprep.subr.mxu0 0.0
        %631 = vmatpush1.msra.mxu0 0.0
        %632 = vmatprep.subr.mxu0 0.0
        %633 = vmatpush1.msra.mxu0 0.0
        %634 = vmatprep.subr.mxu0 0.0
        %635 = vmatpush1.msra.mxu0 0.0
        %636 = vmatprep.subr.mxu0 0.0
        %637 = vmatpush1.msra.mxu0 0.0
        %638 = vmatprep.subr.mxu0 0.0
        %639 = vmatpush1.msra.mxu0 0.0
        %640 = vmatprep.subr.mxu0 0.0
        %641 = vmatpush1.msra.mxu0 0.0
        %642 = vmatprep.subr.mxu0 0.0
        %643 = vmatpush1.msra.mxu0 0.0
        %644 = vmatprep.subr.mxu0 0.0
        %645 = vmatpush1.msra.mxu0 0.0
        %646 = vmatprep.mubr.f32.mxu0 0.0
        %647 = vmatmul.mubr.f32.gmra.mrb[0].mxu0 %v580
        %v648 = vpop.f32.mrb[0].mxu0
        %v649 = vadd.f32 0.0, %v648
        %v650 = vpop.f32.mrb[0].mxu0
        %651 = vdwg.mxu0
        %v652 = vld [vmem:[#allocation11] sm:$0xff]
        %v653 = vld [vmem:[#allocation11 + $0x8] sm:$0xff]
        %v654 = vld [vmem:[#allocation11 + $0x10] sm:$0xff]
        %v655 = vld [vmem:[#allocation11 + $0x18] sm:$0xff]
        %v657 = vsel %vm501, %v496, 0
        %659 = vmatprep.subr.mxu0 0.0
        %660 = vmatpush1.msra.mxu0 %v652
        %661 = vmatprep.subr.mxu0 0.0
        %662 = vmatpush1.msra.mxu0 %v653
        %663 = vmatprep.subr.mxu0 0.0
        %664 = vmatpush1.msra.mxu0 %v654
        %665 = vmatprep.subr.mxu0 0.0
        %666 = vmatpush1.msra.mxu0 %v655
        %667 = vmatprep.subr.mxu0 0.0
        %668 = vmatpush1.msra.mxu0 0.0
        %669 = vmatprep.subr.mxu0 0.0
        %670 = vmatpush1.msra.mxu0 0.0
        %671 = vmatprep.subr.mxu0 0.0
        %672 = vmatpush1.msra.mxu0 0.0
        %673 = vmatprep.subr.mxu0 0.0
        %674 = vmatpush1.msra.mxu0 0.0
        %675 = vmatprep.subr.mxu0 0.0
        %676 = vmatpush1.msra.mxu0 0.0
        %677 = vmatprep.subr.mxu0 0.0
        %678 = vmatpush1.msra.mxu0 0.0
        %679 = vmatprep.subr.mxu0 0.0
        %680 = vmatpush1.msra.mxu0 0.0
        %681 = vmatprep.subr.mxu0 0.0
        %682 = vmatpush1.msra.mxu0 0.0
        %683 = vmatprep.subr.mxu0 0.0
        %684 = vmatpush1.msra.mxu0 0.0
        %685 = vmatprep.subr.mxu0 0.0
        %686 = vmatpush1.msra.mxu0 0.0
        %687 = vmatprep.subr.mxu0 0.0
        %688 = vmatpush1.msra.mxu0 0.0
        %689 = vmatprep.subr.mxu0 0.0
        %690 = vmatpush1.msra.mxu0 0.0
        %691 = vmatprep.subr.mxu0 0.0
        %692 = vmatpush1.msra.mxu0 0.0
        %693 = vmatprep.subr.mxu0 0.0
        %694 = vmatpush1.msra.mxu0 0.0
        %695 = vmatprep.subr.mxu0 0.0
        %696 = vmatpush1.msra.mxu0 0.0
        %697 = vmatprep.subr.mxu0 0.0
        %698 = vmatpush1.msra.mxu0 0.0
        %699 = vmatprep.subr.mxu0 0.0
        %700 = vmatpush1.msra.mxu0 0.0
        %701 = vmatprep.subr.mxu0 0.0
        %702 = vmatpush1.msra.mxu0 0.0
        %703 = vmatprep.subr.mxu0 0.0
        %704 = vmatpush1.msra.mxu0 0.0
        %705 = vmatprep.subr.mxu0 0.0
        %706 = vmatpush1.msra.mxu0 0.0
        %707 = vmatprep.subr.mxu0 0.0
        %708 = vmatpush1.msra.mxu0 0.0
        %709 = vmatprep.subr.mxu0 0.0
        %710 = vmatpush1.msra.mxu0 0.0
        %711 = vmatprep.subr.mxu0 0.0
        %712 = vmatpush1.msra.mxu0 0.0
        %713 = vmatprep.subr.mxu0 0.0
        %714 = vmatpush1.msra.mxu0 0.0
        %715 = vmatprep.subr.mxu0 0.0
        %716 = vmatpush1.msra.mxu0 0.0
        %717 = vmatprep.subr.mxu0 0.0
        %718 = vmatpush1.msra.mxu0 0.0
        %719 = vmatprep.subr.mxu0 0.0
        %720 = vmatpush1.msra.mxu0 0.0
        %721 = vmatprep.subr.mxu0 0.0
        %722 = vmatpush1.msra.mxu0 0.0
        %723 = vmatprep.mubr.f32.mxu0 0.0
        %724 = vmatmul.mubr.f32.gmra.mrb[0].mxu0 %v657
        %v725 = vpop.f32.mrb[0].mxu0
        %v726 = vadd.f32 0.0, %v725
        %v727 = vpop.f32.mrb[0].mxu0
        %728 = vdwg.mxu0
        %v729 = vld [vmem:[#allocation13] sm:$0xff]
        %v730 = vld [vmem:[#allocation13 + $0x8] sm:$0xff]
        %v731 = vld [vmem:[#allocation13 + $0x10] sm:$0xff]
        %v732 = vld [vmem:[#allocation13 + $0x18] sm:$0xff]
        %vm733 = vcmask 64512
        %v735 = vsel %vm733, %v572, 0
        %v738 = vsel %vm733, %v649, 0
        %740 = vmatprep.subr.mxu0 0.0
        %741 = vmatpush1.xpose.msra.mxu0 %v738
        %742 = vmatprep.subr.mxu0 0.0
        %743 = vmatpush1.xpose.msra.mxu0 0.0
        %744 = vmatprep.subr.mxu0 0.0
        %745 = vmatpush1.xpose.msra.mxu0 0.0
        %746 = vmatprep.subr.mxu0 0.0
        %747 = vmatpush1.xpose.msra.mxu0 0.0
        %748 = vmatprep.subr.mxu0 0.0
        %749 = vmatpush1.xpose.msra.mxu0 0.0
        %750 = vmatprep.subr.mxu0 0.0
        %751 = vmatpush1.xpose.msra.mxu0 0.0
        %752 = vmatprep.subr.mxu0 0.0
        %753 = vmatpush1.xpose.msra.mxu0 0.0
        %754 = vmatprep.subr.mxu0 0.0
        %755 = vmatpush1.xpose.msra.mxu0 0.0
        %756 = vmatprep.subr.mxu0 0.0
        %757 = vmatpush1.xpose.msra.mxu0 0.0
        %758 = vmatprep.subr.mxu0 0.0
        %759 = vmatpush1.xpose.msra.mxu0 0.0
        %760 = vmatprep.subr.mxu0 0.0
        %761 = vmatpush1.xpose.msra.mxu0 0.0
        %762 = vmatprep.subr.mxu0 0.0
        %763 = vmatpush1.xpose.msra.mxu0 0.0
        %764 = vmatprep.subr.mxu0 0.0
        %765 = vmatpush1.xpose.msra.mxu0 0.0
        %766 = vmatprep.subr.mxu0 0.0
        %767 = vmatpush1.xpose.msra.mxu0 0.0
        %768 = vmatprep.subr.mxu0 0.0
        %769 = vmatpush1.xpose.msra.mxu0 0.0
        %770 = vmatprep.subr.mxu0 0.0
        %771 = vmatpush1.xpose.msra.mxu0 0.0
        %772 = vmatprep.subr.mxu0 0.0
        %773 = vmatpush1.xpose.msra.mxu0 0.0
        %774 = vmatprep.subr.mxu0 0.0
        %775 = vmatpush1.xpose.msra.mxu0 0.0
        %776 = vmatprep.subr.mxu0 0.0
        %777 = vmatpush1.xpose.msra.mxu0 0.0
        %778 = vmatprep.subr.mxu0 0.0
        %779 = vmatpush1.xpose.msra.mxu0 0.0
        %780 = vmatprep.subr.mxu0 0.0
        %781 = vmatpush1.xpose.msra.mxu0 0.0
        %782 = vmatprep.subr.mxu0 0.0
        %783 = vmatpush1.xpose.msra.mxu0 0.0
        %784 = vmatprep.subr.mxu0 0.0
        %785 = vmatpush1.xpose.msra.mxu0 0.0
        %786 = vmatprep.subr.mxu0 0.0
        %787 = vmatpush1.xpose.msra.mxu0 0.0
        %788 = vmatprep.subr.mxu0 0.0
        %789 = vmatpush1.xpose.msra.mxu0 0.0
        %790 = vmatprep.subr.mxu0 0.0
        %791 = vmatpush1.xpose.msra.mxu0 0.0
        %792 = vmatprep.subr.mxu0 0.0
        %793 = vmatpush1.xpose.msra.mxu0 0.0
        %794 = vmatprep.subr.mxu0 0.0
        %795 = vmatpush1.xpose.msra.mxu0 0.0
        %796 = vmatprep.subr.mxu0 0.0
        %797 = vmatpush1.xpose.msra.mxu0 0.0
        %798 = vmatprep.subr.mxu0 0.0
        %799 = vmatpush1.xpose.msra.mxu0 0.0
        %800 = vmatprep.subr.mxu0 0.0
        %801 = vmatpush1.xpose.msra.mxu0 0.0
        %802 = vmatprep.subr.mxu0 0.0
        %803 = vmatpush1.xpose.msra.mxu0 0.0
        %804 = vmatprep.mubr.f32.mxu0 0.0
        %805 = vmatmul.mubr.f32.gmra.mrb[0].mxu0 %v735
        %v806 = vpop.f32.mrb[0].mxu0
        %v807 = vadd.f32 0.0, %v806
        %v808 = vpop.f32.mrb[0].mxu0
        %809 = vdwg.mxu0
        %v810 = vmul.f32 %v807, 0.35355338
        %v811 = vsel %vm733, %v810, -inf
        %812 = vmax.xlane.f32.xlu0 %v811
        %v813 = vpop.xlane.xlu0 %812
        %v814 = vsub.f32 %v810, %v813
        %v815 = vmul.f32 %v814, 1.442695
        %v816 = vpow.pop %v815
        %v817 = vsel %vm733, %v816, 0.0
        %818 = vadd.xlane.f32.xlu0 %v817
        %v819 = vpop.xlane.xlu0 %818
        %v820 = vrcp.pop %v819
        %v821 = vmul.f32 %v816, %v820
        %v823 = vsel %vm733, %v821, 0
        %825 = vmatprep.subr.mxu0 0.0
        %826 = vmatpush1.msra.mxu0 %v726
        %827 = vmatprep.subr.mxu0 0.0
        %828 = vmatpush1.msra.mxu0 0.0
        %829 = vmatprep.subr.mxu0 0.0
        %830 = vmatpush1.msra.mxu0 0.0
        %831 = vmatprep.subr.mxu0 0.0
        %832 = vmatpush1.msra.mxu0 0.0
        %833 = vmatprep.subr.mxu0 0.0
        %834 = vmatpush1.msra.mxu0 0.0
        %835 = vmatprep.subr.mxu0 0.0
        %836 = vmatpush1.msra.mxu0 0.0
        %837 = vmatprep.subr.mxu0 0.0
        %838 = vmatpush1.msra.mxu0 0.0
        %839 = vmatprep.subr.mxu0 0.0
        %840 = vmatpush1.msra.mxu0 0.0
        %841 = vmatprep.subr.mxu0 0.0
        %842 = vmatpush1.msra.mxu0 0.0
        %843 = vmatprep.subr.mxu0 0.0
        %844 = vmatpush1.msra.mxu0 0.0
        %845 = vmatprep.subr.mxu0 0.0
        %846 = vmatpush1.msra.mxu0 0.0
        %847 = vmatprep.subr.mxu0 0.0
        %848 = vmatpush1.msra.mxu0 0.0
        %849 = vmatprep.subr.mxu0 0.0
        %850 = vmatpush1.msra.mxu0 0.0
        %851 = vmatprep.subr.mxu0 0.0
        %852 = vmatpush1.msra.mxu0 0.0
        %853 = vmatprep.subr.mxu0 0.0
        %854 = vmatpush1.msra.mxu0 0.0
        %855 = vmatprep.subr.mxu0 0.0
        %856 = vmatpush1.msra.mxu0 0.0
        %857 = vmatprep.subr.mxu0 0.0
        %858 = vmatpush1.msra.mxu0 0.0
        %859 = vmatprep.subr.mxu0 0.0
        %860 = vmatpush1.msra.mxu0 0.0
        %861 = vmatprep.subr.mxu0 0.0
        %862 = vmatpush1.msra.mxu0 0.0
        %863 = vmatprep.subr.mxu0 0.0
        %864 = vmatpush1.msra.mxu0 0.0
        %865 = vmatprep.subr.mxu0 0.0
        %866 = vmatpush1.msra.mxu0 0.0
        %867 = vmatprep.subr.mxu0 0.0
        %868 = vmatpush1.msra.mxu0 0.0
        %869 = vmatprep.subr.mxu0 0.0
        %870 = vmatpush1.msra.mxu0 0.0
        %871 = vmatprep.subr.mxu0 0.0
        %872 = vmatpush1.msra.mxu0 0.0
        %873 = vmatprep.subr.mxu0 0.0
        %874 = vmatpush1.msra.mxu0 0.0
        %875 = vmatprep.subr.mxu0 0.0
        %876 = vmatpush1.msra.mxu0 0.0
        %877 = vmatprep.subr.mxu0 0.0
        %878 = vmatpush1.msra.mxu0 0.0
        %879 = vmatprep.subr.mxu0 0.0
        %880 = vmatpush1.msra.mxu0 0.0
        %881 = vmatprep.subr.mxu0 0.0
        %882 = vmatpush1.msra.mxu0 0.0
        %883 = vmatprep.subr.mxu0 0.0
        %884 = vmatpush1.msra.mxu0 0.0
        %885 = vmatprep.subr.mxu0 0.0
        %886 = vmatpush1.msra.mxu0 0.0
        %887 = vmatprep.subr.mxu0 0.0
        %888 = vmatpush1.msra.mxu0 0.0
        %889 = vmatprep.mubr.f32.mxu0 0.0
        %890 = vmatmul.mubr.f32.gmra.mrb[0].mxu0 %v823
        %v891 = vpop.f32.mrb[0].mxu0
        %v892 = vadd.f32 0.0, %v891
        %v893 = vpop.f32.mrb[0].mxu0
        %894 = vdwg.mxu0
        %895 = vrot.lane.b32.xlu0 %v572, 120
        %v896 = vpop.permute.xlu0 %895
        %897 = vrot.lane.b32.xlu0 %v649, 120
        %v898 = vpop.permute.xlu0 %897
        %v899 = vsel %vm733, %v896, 0
        %v901 = vsel %vm733, %v898, 0
        %903 = vmatprep.subr.mxu0 0.0
        %904 = vmatpush1.xpose.msra.mxu0 %v901
        %905 = vmatprep.subr.mxu0 0.0
        %906 = vmatpush1.xpose.msra.mxu0 0.0
        %907 = vmatprep.subr.mxu0 0.0
        %908 = vmatpush1.xpose.msra.mxu0 0.0
        %909 = vmatprep.subr.mxu0 0.0
        %910 = vmatpush1.xpose.msra.mxu0 0.0
        %911 = vmatprep.subr.mxu0 0.0
        %912 = vmatpush1.xpose.msra.mxu0 0.0
        %913 = vmatprep.subr.mxu0 0.0
        %914 = vmatpush1.xpose.msra.mxu0 0.0
        %915 = vmatprep.subr.mxu0 0.0
        %916 = vmatpush1.xpose.msra.mxu0 0.0
        %917 = vmatprep.subr.mxu0 0.0
        %918 = vmatpush1.xpose.msra.mxu0 0.0
        %919 = vmatprep.subr.mxu0 0.0
        %920 = vmatpush1.xpose.msra.mxu0 0.0
        %921 = vmatprep.subr.mxu0 0.0
        %922 = vmatpush1.xpose.msra.mxu0 0.0
        %923 = vmatprep.subr.mxu0 0.0
        %924 = vmatpush1.xpose.msra.mxu0 0.0
        %925 = vmatprep.subr.mxu0 0.0
        %926 = vmatpush1.xpose.msra.mxu0 0.0
        %927 = vmatprep.subr.mxu0 0.0
        %928 = vmatpush1.xpose.msra.mxu0 0.0
        %929 = vmatprep.subr.mxu0 0.0
        %930 = vmatpush1.xpose.msra.mxu0 0.0
        %931 = vmatprep.subr.mxu0 0.0
        %932 = vmatpush1.xpose.msra.mxu0 0.0
        %933 = vmatprep.subr.mxu0 0.0
        %934 = vmatpush1.xpose.msra.mxu0 0.0
        %935 = vmatprep.subr.mxu0 0.0
        %936 = vmatpush1.xpose.msra.mxu0 0.0
        %937 = vmatprep.subr.mxu0 0.0
        %938 = vmatpush1.xpose.msra.mxu0 0.0
        %939 = vmatprep.subr.mxu0 0.0
        %940 = vmatpush1.xpose.msra.mxu0 0.0
        %941 = vmatprep.subr.mxu0 0.0
        %942 = vmatpush1.xpose.msra.mxu0 0.0
        %943 = vmatprep.subr.mxu0 0.0
        %944 = vmatpush1.xpose.msra.mxu0 0.0
        %945 = vmatprep.subr.mxu0 0.0
        %946 = vmatpush1.xpose.msra.mxu0 0.0
        %947 = vmatprep.subr.mxu0 0.0
        %948 = vmatpush1.xpose.msra.mxu0 0.0
        %949 = vmatprep.subr.mxu0 0.0
        %950 = vmatpush1.xpose.msra.mxu0 0.0
        %951 = vmatprep.subr.mxu0 0.0
        %952 = vmatpush1.xpose.msra.mxu0 0.0
        %953 = vmatprep.subr.mxu0 0.0
        %954 = vmatpush1.xpose.msra.mxu0 0.0
        %955 = vmatprep.subr.mxu0 0.0
        %956 = vmatpush1.xpose.msra.mxu0 0.0
        %957 = vmatprep.subr.mxu0 0.0
        %958 = vmatpush1.xpose.msra.mxu0 0.0
        %959 = vmatprep.subr.mxu0 0.0
        %960 = vmatpush1.xpose.msra.mxu0 0.0
        %961 = vmatprep.subr.mxu0 0.0
        %962 = vmatpush1.xpose.msra.mxu0 0.0
        %963 = vmatprep.subr.mxu0 0.0
        %964 = vmatpush1.xpose.msra.mxu0 0.0
        %965 = vmatprep.subr.mxu0 0.0
        %966 = vmatpush1.xpose.msra.mxu0 0.0
        %967 = vmatprep.mubr.f32.mxu0 0.0
        %968 = vmatmul.mubr.f32.gmra.mrb[0].mxu0 %v899
        %v969 = vpop.f32.mrb[0].mxu0
        %v970 = vadd.f32 0.0, %v969
        %v971 = vpop.f32.mrb[0].mxu0
        %972 = vdwg.mxu0
        %v973 = vmul.f32 %v970, 0.35355338
        %v974 = vsel %vm733, %v973, -inf
        %975 = vmax.xlane.f32.xlu0 %v974
        %v976 = vpop.xlane.xlu0 %975
        %v977 = vsub.f32 %v973, %v976
        %v978 = vmul.f32 %v977, 1.442695
        %v979 = vpow.pop %v978
        %v980 = vsel %vm733, %v979, 0.0
        %981 = vadd.xlane.f32.xlu0 %v980
        %v982 = vpop.xlane.xlu0 %981
        %v983 = vrcp.pop %v982
        %v984 = vmul.f32 %v979, %v983
        %986 = vrot.lane.b32.xlu0 %v726, 120
        %v987 = vpop.permute.xlu0 %986
        %v990 = vsel %vm733, %v984, 0
        %992 = vmatprep.subr.mxu0 0.0
        %993 = vmatpush1.msra.mxu0 %v987
        %994 = vmatprep.subr.mxu0 0.0
        %995 = vmatpush1.msra.mxu0 0.0
        %996 = vmatprep.subr.mxu0 0.0
        %997 = vmatpush1.msra.mxu0 0.0
        %998 = vmatprep.subr.mxu0 0.0
        %999 = vmatpush1.msra.mxu0 0.0
        %1000 = vmatprep.subr.mxu0 0.0
        %1001 = vmatpush1.msra.mxu0 0.0
        %1002 = vmatprep.subr.mxu0 0.0
        %1003 = vmatpush1.msra.mxu0 0.0
        %1004 = vmatprep.subr.mxu0 0.0
        %1005 = vmatpush1.msra.mxu0 0.0
        %1006 = vmatprep.subr.mxu0 0.0
        %1007 = vmatpush1.msra.mxu0 0.0
        %1008 = vmatprep.subr.mxu0 0.0
        %1009 = vmatpush1.msra.mxu0 0.0
        %1010 = vmatprep.subr.mxu0 0.0
        %1011 = vmatpush1.msra.mxu0 0.0
        %1012 = vmatprep.subr.mxu0 0.0
        %1013 = vmatpush1.msra.mxu0 0.0
        %1014 = vmatprep.subr.mxu0 0.0
        %1015 = vmatpush1.msra.mxu0 0.0
        %1016 = vmatprep.subr.mxu0 0.0
        %1017 = vmatpush1.msra.mxu0 0.0
        %1018 = vmatprep.subr.mxu0 0.0
        %1019 = vmatpush1.msra.mxu0 0.0
        %1020 = vmatprep.subr.mxu0 0.0
        %1021 = vmatpush1.msra.mxu0 0.0
        %1022 = vmatprep.subr.mxu0 0.0
        %1023 = vmatpush1.msra.mxu0 0.0
        %1024 = vmatprep.subr.mxu0 0.0
        %1025 = vmatpush1.msra.mxu0 0.0
        %1026 = vmatprep.subr.mxu0 0.0
        %1027 = vmatpush1.msra.mxu0 0.0
        %1028 = vmatprep.subr.mxu0 0.0
        %1029 = vmatpush1.msra.mxu0 0.0
        %1030 = vmatprep.subr.mxu0 0.0
        %1031 = vmatpush1.msra.mxu0 0.0
        %1032 = vmatprep.subr.mxu0 0.0
        %1033 = vmatpush1.msra.mxu0 0.0
        %1034 = vmatprep.subr.mxu0 0.0
        %1035 = vmatpush1.msra.mxu0 0.0
        %1036 = vmatprep.subr.mxu0 0.0
        %1037 = vmatpush1.msra.mxu0 0.0
        %1038 = vmatprep.subr.mxu0 0.0
        %1039 = vmatpush1.msra.mxu0 0.0
        %1040 = vmatprep.subr.mxu0 0.0
        %1041 = vmatpush1.msra.mxu0 0.0
        %1042 = vmatprep.subr.mxu0 0.0
        %1043 = vmatpush1.msra.mxu0 0.0
        %1044 = vmatprep.subr.mxu0 0.0
        %1045 = vmatpush1.msra.mxu0 0.0
        %1046 = vmatprep.subr.mxu0 0.0
        %1047 = vmatpush1.msra.mxu0 0.0
        %1048 = vmatprep.subr.mxu0 0.0
        %1049 = vmatpush1.msra.mxu0 0.0
        %1050 = vmatprep.subr.mxu0 0.0
        %1051 = vmatpush1.msra.mxu0 0.0
        %1052 = vmatprep.subr.mxu0 0.0
        %1053 = vmatpush1.msra.mxu0 0.0
        %1054 = vmatprep.subr.mxu0 0.0
        %1055 = vmatpush1.msra.mxu0 0.0
        %1056 = vmatprep.mubr.f32.mxu0 0.0
        %1057 = vmatmul.mubr.f32.gmra.mrb[0].mxu0 %v990
        %v1058 = vpop.f32.mrb[0].mxu0
        %v1059 = vadd.f32 0.0, %v1058
        %v1060 = vpop.f32.mrb[0].mxu0
        %1061 = vdwg.mxu0
        %v1063 = vsel %vm733, %v1059, 0
        %1065 = vmatprep.subr.mxu0 0.0
        %1066 = vmatpush1.msra.mxu0 %v730
        %1067 = vmatprep.subr.mxu0 0.0
        %1068 = vmatpush1.msra.mxu0 0.0
        %1069 = vmatprep.subr.mxu0 0.0
        %1070 = vmatpush1.msra.mxu0 0.0
        %1071 = vmatprep.subr.mxu0 0.0
        %1072 = vmatpush1.msra.mxu0 0.0
        %1073 = vmatprep.subr.mxu0 0.0
        %1074 = vmatpush1.msra.mxu0 0.0
        %1075 = vmatprep.subr.mxu0 0.0
        %1076 = vmatpush1.msra.mxu0 0.0
        %1077 = vmatprep.subr.mxu0 0.0
        %1078 = vmatpush1.msra.mxu0 0.0
        %1079 = vmatprep.subr.mxu0 0.0
        %1080 = vmatpush1.msra.mxu0 0.0
        %1081 = vmatprep.subr.mxu0 0.0
        %1082 = vmatpush1.msra.mxu0 0.0
        %1083 = vmatprep.subr.mxu0 0.0
        %1084 = vmatpush1.msra.mxu0 0.0
        %1085 = vmatprep.subr.mxu0 0.0
        %1086 = vmatpush1.msra.mxu0 0.0
        %1087 = vmatprep.subr.mxu0 0.0
        %1088 = vmatpush1.msra.mxu0 0.0
        %1089 = vmatprep.subr.mxu0 0.0
        %1090 = vmatpush1.msra.mxu0 0.0
        %1091 = vmatprep.subr.mxu0 0.0
        %1092 = vmatpush1.msra.mxu0 0.0
        %1093 = vmatprep.subr.mxu0 0.0
        %1094 = vmatpush1.msra.mxu0 0.0
        %1095 = vmatprep.subr.mxu0 0.0
        %1096 = vmatpush1.msra.mxu0 0.0
        %1097 = vmatprep.subr.mxu0 0.0
        %1098 = vmatpush1.msra.mxu0 0.0
        %1099 = vmatprep.subr.mxu0 0.0
        %1100 = vmatpush1.msra.mxu0 0.0
        %1101 = vmatprep.subr.mxu0 0.0
        %1102 = vmatpush1.msra.mxu0 0.0
        %1103 = vmatprep.subr.mxu0 0.0
        %1104 = vmatpush1.msra.mxu0 0.0
        %1105 = vmatprep.subr.mxu0 0.0
        %1106 = vmatpush1.msra.mxu0 0.0
        %1107 = vmatprep.subr.mxu0 0.0
        %1108 = vmatpush1.msra.mxu0 0.0
        %1109 = vmatprep.subr.mxu0 0.0
        %1110 = vmatpush1.msra.mxu0 0.0
        %1111 = vmatprep.subr.mxu0 0.0
        %1112 = vmatpush1.msra.mxu0 0.0
        %1113 = vmatprep.subr.mxu0 0.0
        %1114 = vmatpush1.msra.mxu0 0.0
        %1115 = vmatprep.subr.mxu0 0.0
        %1116 = vmatpush1.msra.mxu0 0.0
        %1117 = vmatprep.subr.mxu0 0.0
        %1118 = vmatpush1.msra.mxu0 0.0
        %1119 = vmatprep.subr.mxu0 0.0
        %1120 = vmatpush1.msra.mxu0 0.0
        %1121 = vmatprep.subr.mxu0 0.0
        %1122 = vmatpush1.msra.mxu0 0.0
        %1123 = vmatprep.subr.mxu0 0.0
        %1124 = vmatpush1.msra.mxu0 0.0
        %1125 = vmatprep.subr.mxu0 0.0
        %1126 = vmatpush1.msra.mxu0 0.0
        %1127 = vmatprep.subr.mxu0 0.0
        %1128 = vmatpush1.msra.mxu0 0.0
        %1129 = vmatprep.mubr.f32.mxu0 0.0
        %1130 = vmatmul.mubr.f32.gmra.mrb[0].mxu0 %v1063
        %v1131 = vpop.f32.mrb[0].mxu0
        %v1132 = vadd.f32 0.0, %v1131
        %v1133 = vpop.f32.mrb[0].mxu0
        %1134 = vdwg.mxu0
        %v1136 = vsel %vm733, %v892, 0
        %1138 = vmatprep.subr.mxu0 0.0
        %1139 = vmatpush1.msra.mxu0 %v729
        %1140 = vmatprep.subr.mxu0 0.0
        %1141 = vmatpush1.msra.mxu0 0.0
        %1142 = vmatprep.subr.mxu0 0.0
        %1143 = vmatpush1.msra.mxu0 0.0
        %1144 = vmatprep.subr.mxu0 0.0
        %1145 = vmatpush1.msra.mxu0 0.0
        %1146 = vmatprep.subr.mxu0 0.0
        %1147 = vmatpush1.msra.mxu0 0.0
        %1148 = vmatprep.subr.mxu0 0.0
        %1149 = vmatpush1.msra.mxu0 0.0
        %1150 = vmatprep.subr.mxu0 0.0
        %1151 = vmatpush1.msra.mxu0 0.0
        %1152 = vmatprep.subr.mxu0 0.0
        %1153 = vmatpush1.msra.mxu0 0.0
        %1154 = vmatprep.subr.mxu0 0.0
        %1155 = vmatpush1.msra.mxu0 0.0
        %1156 = vmatprep.subr.mxu0 0.0
        %1157 = vmatpush1.msra.mxu0 0.0
        %1158 = vmatprep.subr.mxu0 0.0
        %1159 = vmatpush1.msra.mxu0 0.0
        %1160 = vmatprep.subr.mxu0 0.0
        %1161 = vmatpush1.msra.mxu0 0.0
        %1162 = vmatprep.subr.mxu0 0.0
        %1163 = vmatpush1.msra.mxu0 0.0
        %1164 = vmatprep.subr.mxu0 0.0
        %1165 = vmatpush1.msra.mxu0 0.0
        %1166 = vmatprep.subr.mxu0 0.0
        %1167 = vmatpush1.msra.mxu0 0.0
        %1168 = vmatprep.subr.mxu0 0.0
        %1169 = vmatpush1.msra.mxu0 0.0
        %1170 = vmatprep.subr.mxu0 0.0
        %1171 = vmatpush1.msra.mxu0 0.0
        %1172 = vmatprep.subr.mxu0 0.0
        %1173 = vmatpush1.msra.mxu0 0.0
        %1174 = vmatprep.subr.mxu0 0.0
        %1175 = vmatpush1.msra.mxu0 0.0
        %1176 = vmatprep.subr.mxu0 0.0
        %1177 = vmatpush1.msra.mxu0 0.0
        %1178 = vmatprep.subr.mxu0 0.0
        %1179 = vmatpush1.msra.mxu0 0.0
        %1180 = vmatprep.subr.mxu0 0.0
        %1181 = vmatpush1.msra.mxu0 0.0
        %1182 = vmatprep.subr.mxu0 0.0
        %1183 = vmatpush1.msra.mxu0 0.0
        %1184 = vmatprep.subr.mxu0 0.0
        %1185 = vmatpush1.msra.mxu0 0.0
        %1186 = vmatprep.subr.mxu0 0.0
        %1187 = vmatpush1.msra.mxu0 0.0
        %1188 = vmatprep.subr.mxu0 0.0
        %1189 = vmatpush1.msra.mxu0 0.0
        %1190 = vmatprep.subr.mxu0 0.0
        %1191 = vmatpush1.msra.mxu0 0.0
        %1192 = vmatprep.subr.mxu0 0.0
        %1193 = vmatpush1.msra.mxu0 0.0
        %1194 = vmatprep.subr.mxu0 0.0
        %1195 = vmatpush1.msra.mxu0 0.0
        %1196 = vmatprep.subr.mxu0 0.0
        %1197 = vmatpush1.msra.mxu0 0.0
        %1198 = vmatprep.subr.mxu0 0.0
        %1199 = vmatpush1.msra.mxu0 0.0
        %1200 = vmatprep.subr.mxu0 0.0
        %1201 = vmatpush1.msra.mxu0 0.0
        %1202 = vmatprep.mubr.f32.mxu0 0.0
        %1203 = vmatmul.mubr.f32.gmra.mrb[0].mxu0 %v1136
        %v1204 = vpop.f32.mrb[0].mxu0
        %v1205 = vadd.f32 %v1132, %v1204
        %v1206 = vpop.f32.mrb[0].mxu0
        %1207 = vdwg.mxu0
        %1208 = vrot.lane.b32.xlu0 %v572, 112
        %v1209 = vpop.permute.xlu0 %1208
        %1210 = vrot.lane.b32.xlu0 %v649, 112
        %v1211 = vpop.permute.xlu0 %1210
        %v1212 = vsel %vm733, %v1209, 0
        %v1214 = vsel %vm733, %v1211, 0
        %1216 = vmatprep.subr.mxu0 0.0
        %1217 = vmatpush1.xpose.msra.mxu0 %v1214
        %1218 = vmatprep.subr.mxu0 0.0
        %1219 = vmatpush1.xpose.msra.mxu0 0.0
        %1220 = vmatprep.subr.mxu0 0.0
        %1221 = vmatpush1.xpose.msra.mxu0 0.0
        %1222 = vmatprep.subr.mxu0 0.0
        %1223 = vmatpush1.xpose.msra.mxu0 0.0
        %1224 = vmatprep.subr.mxu0 0.0
        %1225 = vmatpush1.xpose.msra.mxu0 0.0
        %1226 = vmatprep.subr.mxu0 0.0
        %1227 = vmatpush1.xpose.msra.mxu0 0.0
        %1228 = vmatprep.subr.mxu0 0.0
        %1229 = vmatpush1.xpose.msra.mxu0 0.0
        %1230 = vmatprep.subr.mxu0 0.0
        %1231 = vmatpush1.xpose.msra.mxu0 0.0
        %1232 = vmatprep.subr.mxu0 0.0
        %1233 = vmatpush1.xpose.msra.mxu0 0.0
        %1234 = vmatprep.subr.mxu0 0.0
        %1235 = vmatpush1.xpose.msra.mxu0 0.0
        %1236 = vmatprep.subr.mxu0 0.0
        %1237 = vmatpush1.xpose.msra.mxu0 0.0
        %1238 = vmatprep.subr.mxu0 0.0
        %1239 = vmatpush1.xpose.msra.mxu0 0.0
        %1240 = vmatprep.subr.mxu0 0.0
        %1241 = vmatpush1.xpose.msra.mxu0 0.0
        %1242 = vmatprep.subr.mxu0 0.0
        %1243 = vmatpush1.xpose.msra.mxu0 0.0
        %1244 = vmatprep.subr.mxu0 0.0
        %1245 = vmatpush1.xpose.msra.mxu0 0.0
        %1246 = vmatprep.subr.mxu0 0.0
        %1247 = vmatpush1.xpose.msra.mxu0 0.0
        %1248 = vmatprep.subr.mxu0 0.0
        %1249 = vmatpush1.xpose.msra.mxu0 0.0
        %1250 = vmatprep.subr.mxu0 0.0
        %1251 = vmatpush1.xpose.msra.mxu0 0.0
        %1252 = vmatprep.subr.mxu0 0.0
        %1253 = vmatpush1.xpose.msra.mxu0 0.0
        %1254 = vmatprep.subr.mxu0 0.0
        %1255 = vmatpush1.xpose.msra.mxu0 0.0
        %1256 = vmatprep.subr.mxu0 0.0
        %1257 = vmatpush1.xpose.msra.mxu0 0.0
        %1258 = vmatprep.subr.mxu0 0.0
        %1259 = vmatpush1.xpose.msra.mxu0 0.0
        %1260 = vmatprep.subr.mxu0 0.0
        %1261 = vmatpush1.xpose.msra.mxu0 0.0
        %1262 = vmatprep.subr.mxu0 0.0
        %1263 = vmatpush1.xpose.msra.mxu0 0.0
        %1264 = vmatprep.subr.mxu0 0.0
        %1265 = vmatpush1.xpose.msra.mxu0 0.0
        %1266 = vmatprep.subr.mxu0 0.0
        %1267 = vmatpush1.xpose.msra.mxu0 0.0
        %1268 = vmatprep.subr.mxu0 0.0
        %1269 = vmatpush1.xpose.msra.mxu0 0.0
        %1270 = vmatprep.subr.mxu0 0.0
        %1271 = vmatpush1.xpose.msra.mxu0 0.0
        %1272 = vmatprep.subr.mxu0 0.0
        %1273 = vmatpush1.xpose.msra.mxu0 0.0
        %1274 = vmatprep.subr.mxu0 0.0
        %1275 = vmatpush1.xpose.msra.mxu0 0.0
        %1276 = vmatprep.subr.mxu0 0.0
        %1277 = vmatpush1.xpose.msra.mxu0 0.0
        %1278 = vmatprep.subr.mxu0 0.0
        %1279 = vmatpush1.xpose.msra.mxu0 0.0
        %1280 = vmatprep.mubr.f32.mxu0 0.0
        %1281 = vmatmul.mubr.f32.gmra.mrb[0].mxu0 %v1212
        %v1282 = vpop.f32.mrb[0].mxu0
        %v1283 = vadd.f32 0.0, %v1282
        %v1284 = vpop.f32.mrb[0].mxu0
        %1285 = vdwg.mxu0
        %v1286 = vmul.f32 %v1283, 0.35355338
        %v1287 = vsel %vm733, %v1286, -inf
        %1288 = vmax.xlane.f32.xlu0 %v1287
        %v1289 = vpop.xlane.xlu0 %1288
        %v1290 = vsub.f32 %v1286, %v1289
        %v1291 = vmul.f32 %v1290, 1.442695
        %v1292 = vpow.pop %v1291
        %v1293 = vsel %vm733, %v1292, 0.0
        %1294 = vadd.xlane.f32.xlu0 %v1293
        %v1295 = vpop.xlane.xlu0 %1294
        %v1296 = vrcp.pop %v1295
        %v1297 = vmul.f32 %v1292, %v1296
        %1298 = vrot.lane.b32.xlu0 %v726, 112
        %v1299 = vpop.permute.xlu0 %1298
        %v1302 = vsel %vm733, %v1297, 0
        %1304 = vmatprep.subr.mxu0 0.0
        %1305 = vmatpush1.msra.mxu0 %v1299
        %1306 = vmatprep.subr.mxu0 0.0
        %1307 = vmatpush1.msra.mxu0 0.0
        %1308 = vmatprep.subr.mxu0 0.0
        %1309 = vmatpush1.msra.mxu0 0.0
        %1310 = vmatprep.subr.mxu0 0.0
        %1311 = vmatpush1.msra.mxu0 0.0
        %1312 = vmatprep.subr.mxu0 0.0
        %1313 = vmatpush1.msra.mxu0 0.0
        %1314 = vmatprep.subr.mxu0 0.0
        %1315 = vmatpush1.msra.mxu0 0.0
        %1316 = vmatprep.subr.mxu0 0.0
        %1317 = vmatpush1.msra.mxu0 0.0
        %1318 = vmatprep.subr.mxu0 0.0
        %1319 = vmatpush1.msra.mxu0 0.0
        %1320 = vmatprep.subr.mxu0 0.0
        %1321 = vmatpush1.msra.mxu0 0.0
        %1322 = vmatprep.subr.mxu0 0.0
        %1323 = vmatpush1.msra.mxu0 0.0
        %1324 = vmatprep.subr.mxu0 0.0
        %1325 = vmatpush1.msra.mxu0 0.0
        %1326 = vmatprep.subr.mxu0 0.0
        %1327 = vmatpush1.msra.mxu0 0.0
        %1328 = vmatprep.subr.mxu0 0.0
        %1329 = vmatpush1.msra.mxu0 0.0
        %1330 = vmatprep.subr.mxu0 0.0
        %1331 = vmatpush1.msra.mxu0 0.0
        %1332 = vmatprep.subr.mxu0 0.0
        %1333 = vmatpush1.msra.mxu0 0.0
        %1334 = vmatprep.subr.mxu0 0.0
        %1335 = vmatpush1.msra.mxu0 0.0
        %1336 = vmatprep.subr.mxu0 0.0
        %1337 = vmatpush1.msra.mxu0 0.0
        %1338 = vmatprep.subr.mxu0 0.0
        %1339 = vmatpush1.msra.mxu0 0.0
        %1340 = vmatprep.subr.mxu0 0.0
        %1341 = vmatpush1.msra.mxu0 0.0
        %1342 = vmatprep.subr.mxu0 0.0
        %1343 = vmatpush1.msra.mxu0 0.0
        %1344 = vmatprep.subr.mxu0 0.0
        %1345 = vmatpush1.msra.mxu0 0.0
        %1346 = vmatprep.subr.mxu0 0.0
        %1347 = vmatpush1.msra.mxu0 0.0
        %1348 = vmatprep.subr.mxu0 0.0
        %1349 = vmatpush1.msra.mxu0 0.0
        %1350 = vmatprep.subr.mxu0 0.0
        %1351 = vmatpush1.msra.mxu0 0.0
        %1352 = vmatprep.subr.mxu0 0.0
        %1353 = vmatpush1.msra.mxu0 0.0
        %1354 = vmatprep.subr.mxu0 0.0
        %1355 = vmatpush1.msra.mxu0 0.0
        %1356 = vmatprep.subr.mxu0 0.0
        %1357 = vmatpush1.msra.mxu0 0.0
        %1358 = vmatprep.subr.mxu0 0.0
        %1359 = vmatpush1.msra.mxu0 0.0
        %1360 = vmatprep.subr.mxu0 0.0
        %1361 = vmatpush1.msra.mxu0 0.0
        %1362 = vmatprep.subr.mxu0 0.0
        %1363 = vmatpush1.msra.mxu0 0.0
        %1364 = vmatprep.subr.mxu0 0.0
        %1365 = vmatpush1.msra.mxu0 0.0
        %1366 = vmatprep.subr.mxu0 0.0
        %1367 = vmatpush1.msra.mxu0 0.0
        %1368 = vmatprep.mubr.f32.mxu0 0.0
        %1369 = vmatmul.mubr.f32.gmra.mrb[0].mxu0 %v1302
        %v1370 = vpop.f32.mrb[0].mxu0
        %v1371 = vadd.f32 0.0, %v1370
        %v1372 = vpop.f32.mrb[0].mxu0
        %1373 = vdwg.mxu0
        %v1375 = vsel %vm733, %v1371, 0
        %1377 = vmatprep.subr.mxu0 0.0
        %1378 = vmatpush1.msra.mxu0 %v731
        %1379 = vmatprep.subr.mxu0 0.0
        %1380 = vmatpush1.msra.mxu0 0.0
        %1381 = vmatprep.subr.mxu0 0.0
        %1382 = vmatpush1.msra.mxu0 0.0
        %1383 = vmatprep.subr.mxu0 0.0
        %1384 = vmatpush1.msra.mxu0 0.0
        %1385 = vmatprep.subr.mxu0 0.0
        %1386 = vmatpush1.msra.mxu0 0.0
        %1387 = vmatprep.subr.mxu0 0.0
        %1388 = vmatpush1.msra.mxu0 0.0
        %1389 = vmatprep.subr.mxu0 0.0
        %1390 = vmatpush1.msra.mxu0 0.0
        %1391 = vmatprep.subr.mxu0 0.0
        %1392 = vmatpush1.msra.mxu0 0.0
        %1393 = vmatprep.subr.mxu0 0.0
        %1394 = vmatpush1.msra.mxu0 0.0
        %1395 = vmatprep.subr.mxu0 0.0
        %1396 = vmatpush1.msra.mxu0 0.0
        %1397 = vmatprep.subr.mxu0 0.0
        %1398 = vmatpush1.msra.mxu0 0.0
        %1399 = vmatprep.subr.mxu0 0.0
        %1400 = vmatpush1.msra.mxu0 0.0
        %1401 = vmatprep.subr.mxu0 0.0
        %1402 = vmatpush1.msra.mxu0 0.0
        %1403 = vmatprep.subr.mxu0 0.0
        %1404 = vmatpush1.msra.mxu0 0.0
        %1405 = vmatprep.subr.mxu0 0.0
        %1406 = vmatpush1.msra.mxu0 0.0
        %1407 = vmatprep.subr.mxu0 0.0
        %1408 = vmatpush1.msra.mxu0 0.0
        %1409 = vmatprep.subr.mxu0 0.0
        %1410 = vmatpush1.msra.mxu0 0.0
        %1411 = vmatprep.subr.mxu0 0.0
        %1412 = vmatpush1.msra.mxu0 0.0
        %1413 = vmatprep.subr.mxu0 0.0
        %1414 = vmatpush1.msra.mxu0 0.0
        %1415 = vmatprep.subr.mxu0 0.0
        %1416 = vmatpush1.msra.mxu0 0.0
        %1417 = vmatprep.subr.mxu0 0.0
        %1418 = vmatpush1.msra.mxu0 0.0
        %1419 = vmatprep.subr.mxu0 0.0
        %1420 = vmatpush1.msra.mxu0 0.0
        %1421 = vmatprep.subr.mxu0 0.0
        %1422 = vmatpush1.msra.mxu0 0.0
        %1423 = vmatprep.subr.mxu0 0.0
        %1424 = vmatpush1.msra.mxu0 0.0
        %1425 = vmatprep.subr.mxu0 0.0
        %1426 = vmatpush1.msra.mxu0 0.0
        %1427 = vmatprep.subr.mxu0 0.0
        %1428 = vmatpush1.msra.mxu0 0.0
        %1429 = vmatprep.subr.mxu0 0.0
        %1430 = vmatpush1.msra.mxu0 0.0
        %1431 = vmatprep.subr.mxu0 0.0
        %1432 = vmatpush1.msra.mxu0 0.0
        %1433 = vmatprep.subr.mxu0 0.0
        %1434 = vmatpush1.msra.mxu0 0.0
        %1435 = vmatprep.subr.mxu0 0.0
        %1436 = vmatpush1.msra.mxu0 0.0
        %1437 = vmatprep.subr.mxu0 0.0
        %1438 = vmatpush1.msra.mxu0 0.0
        %1439 = vmatprep.subr.mxu0 0.0
        %1440 = vmatpush1.msra.mxu0 0.0
        %1441 = vmatprep.mubr.f32.mxu0 0.0
        %1442 = vmatmul.mubr.f32.gmra.mrb[0].mxu0 %v1375
        %v1443 = vpop.f32.mrb[0].mxu0
        %v1444 = vadd.f32 0.0, %v1443
        %v1445 = vpop.f32.mrb[0].mxu0
        %1446 = vdwg.mxu0
        %v1447 = vadd.f32 %v1205, %v1444
        %1448 = vrot.lane.b32.xlu0 %v572, 104
        %v1449 = vpop.permute.xlu0 %1448
        %1450 = vrot.lane.b32.xlu0 %v649, 104
        %v1451 = vpop.permute.xlu0 %1450
        %v1452 = vsel %vm733, %v1449, 0
        %v1454 = vsel %vm733, %v1451, 0
        %1456 = vmatprep.subr.mxu0 0.0
        %1457 = vmatpush1.xpose.msra.mxu0 %v1454
        %1458 = vmatprep.subr.mxu0 0.0
        %1459 = vmatpush1.xpose.msra.mxu0 0.0
        %1460 = vmatprep.subr.mxu0 0.0
        %1461 = vmatpush1.xpose.msra.mxu0 0.0
        %1462 = vmatprep.subr.mxu0 0.0
        %1463 = vmatpush1.xpose.msra.mxu0 0.0
        %1464 = vmatprep.subr.mxu0 0.0
        %1465 = vmatpush1.xpose.msra.mxu0 0.0
        %1466 = vmatprep.subr.mxu0 0.0
        %1467 = vmatpush1.xpose.msra.mxu0 0.0
        %1468 = vmatprep.subr.mxu0 0.0
        %1469 = vmatpush1.xpose.msra.mxu0 0.0
        %1470 = vmatprep.subr.mxu0 0.0
        %1471 = vmatpush1.xpose.msra.mxu0 0.0
        %1472 = vmatprep.subr.mxu0 0.0
        %1473 = vmatpush1.xpose.msra.mxu0 0.0
        %1474 = vmatprep.subr.mxu0 0.0
        %1475 = vmatpush1.xpose.msra.mxu0 0.0
        %1476 = vmatprep.subr.mxu0 0.0
        %1477 = vmatpush1.xpose.msra.mxu0 0.0
        %1478 = vmatprep.subr.mxu0 0.0
        %1479 = vmatpush1.xpose.msra.mxu0 0.0
        %1480 = vmatprep.subr.mxu0 0.0
        %1481 = vmatpush1.xpose.msra.mxu0 0.0
        %1482 = vmatprep.subr.mxu0 0.0
        %1483 = vmatpush1.xpose.msra.mxu0 0.0
        %1484 = vmatprep.subr.mxu0 0.0
        %1485 = vmatpush1.xpose.msra.mxu0 0.0
        %1486 = vmatprep.subr.mxu0 0.0
        %1487 = vmatpush1.xpose.msra.mxu0 0.0
        %1488 = vmatprep.subr.mxu0 0.0
        %1489 = vmatpush1.xpose.msra.mxu0 0.0
        %1490 = vmatprep.subr.mxu0 0.0
        %1491 = vmatpush1.xpose.msra.mxu0 0.0
        %1492 = vmatprep.subr.mxu0 0.0
        %1493 = vmatpush1.xpose.msra.mxu0 0.0
        %1494 = vmatprep.subr.mxu0 0.0
        %1495 = vmatpush1.xpose.msra.mxu0 0.0
        %1496 = vmatprep.subr.mxu0 0.0
        %1497 = vmatpush1.xpose.msra.mxu0 0.0
        %1498 = vmatprep.subr.mxu0 0.0
        %1499 = vmatpush1.xpose.msra.mxu0 0.0
        %1500 = vmatprep.subr.mxu0 0.0
        %1501 = vmatpush1.xpose.msra.mxu0 0.0
        %1502 = vmatprep.subr.mxu0 0.0
        %1503 = vmatpush1.xpose.msra.mxu0 0.0
        %1504 = vmatprep.subr.mxu0 0.0
        %1505 = vmatpush1.xpose.msra.mxu0 0.0
        %1506 = vmatprep.subr.mxu0 0.0
        %1507 = vmatpush1.xpose.msra.mxu0 0.0
        %1508 = vmatprep.subr.mxu0 0.0
        %1509 = vmatpush1.xpose.msra.mxu0 0.0
        %1510 = vmatprep.subr.mxu0 0.0
        %1511 = vmatpush1.xpose.msra.mxu0 0.0
        %1512 = vmatprep.subr.mxu0 0.0
        %1513 = vmatpush1.xpose.msra.mxu0 0.0
        %1514 = vmatprep.subr.mxu0 0.0
        %1515 = vmatpush1.xpose.msra.mxu0 0.0
        %1516 = vmatprep.subr.mxu0 0.0
        %1517 = vmatpush1.xpose.msra.mxu0 0.0
        %1518 = vmatprep.subr.mxu0 0.0
        %1519 = vmatpush1.xpose.msra.mxu0 0.0
        %1520 = vmatprep.mubr.f32.mxu0 0.0
        %1521 = vmatmul.mubr.f32.gmra.mrb[0].mxu0 %v1452
        %v1522 = vpop.f32.mrb[0].mxu0
        %v1523 = vadd.f32 0.0, %v1522
        %v1524 = vpop.f32.mrb[0].mxu0
        %1525 = vdwg.mxu0
        %v1526 = vmul.f32 %v1523, 0.35355338
        %v1527 = vsel %vm733, %v1526, -inf
        %1528 = vmax.xlane.f32.xlu0 %v1527
        %v1529 = vpop.xlane.xlu0 %1528
        %v1530 = vsub.f32 %v1526, %v1529
        %v1531 = vmul.f32 %v1530, 1.442695
        %v1532 = vpow.pop %v1531
        %v1533 = vsel %vm733, %v1532, 0.0
        %1534 = vadd.xlane.f32.xlu0 %v1533
        %v1535 = vpop.xlane.xlu0 %1534
        %v1536 = vrcp.pop %v1535
        %v1537 = vmul.f32 %v1532, %v1536
        %1538 = vrot.lane.b32.xlu0 %v726, 104
        %v1539 = vpop.permute.xlu0 %1538
        %v1542 = vsel %vm733, %v1537, 0
        %1544 = vmatprep.subr.mxu0 0.0
        %1545 = vmatpush1.msra.mxu0 %v1539
        %1546 = vmatprep.subr.mxu0 0.0
        %1547 = vmatpush1.msra.mxu0 0.0
        %1548 = vmatprep.subr.mxu0 0.0
        %1549 = vmatpush1.msra.mxu0 0.0
        %1550 = vmatprep.subr.mxu0 0.0
        %1551 = vmatpush1.msra.mxu0 0.0
        %1552 = vmatprep.subr.mxu0 0.0
        %1553 = vmatpush1.msra.mxu0 0.0
        %1554 = vmatprep.subr.mxu0 0.0
        %1555 = vmatpush1.msra.mxu0 0.0
        %1556 = vmatprep.subr.mxu0 0.0
        %1557 = vmatpush1.msra.mxu0 0.0
        %1558 = vmatprep.subr.mxu0 0.0
        %1559 = vmatpush1.msra.mxu0 0.0
        %1560 = vmatprep.subr.mxu0 0.0
        %1561 = vmatpush1.msra.mxu0 0.0
        %1562 = vmatprep.subr.mxu0 0.0
        %1563 = vmatpush1.msra.mxu0 0.0
        %1564 = vmatprep.subr.mxu0 0.0
        %1565 = vmatpush1.msra.mxu0 0.0
        %1566 = vmatprep.subr.mxu0 0.0
        %1567 = vmatpush1.msra.mxu0 0.0
        %1568 = vmatprep.subr.mxu0 0.0
        %1569 = vmatpush1.msra.mxu0 0.0
        %1570 = vmatprep.subr.mxu0 0.0
        %1571 = vmatpush1.msra.mxu0 0.0
        %1572 = vmatprep.subr.mxu0 0.0
        %1573 = vmatpush1.msra.mxu0 0.0
        %1574 = vmatprep.subr.mxu0 0.0
        %1575 = vmatpush1.msra.mxu0 0.0
        %1576 = vmatprep.subr.mxu0 0.0
        %1577 = vmatpush1.msra.mxu0 0.0
        %1578 = vmatprep.subr.mxu0 0.0
        %1579 = vmatpush1.msra.mxu0 0.0
        %1580 = vmatprep.subr.mxu0 0.0
        %1581 = vmatpush1.msra.mxu0 0.0
        %1582 = vmatprep.subr.mxu0 0.0
        %1583 = vmatpush1.msra.mxu0 0.0
        %1584 = vmatprep.subr.mxu0 0.0
        %1585 = vmatpush1.msra.mxu0 0.0
        %1586 = vmatprep.subr.mxu0 0.0
        %1587 = vmatpush1.msra.mxu0 0.0
        %1588 = vmatprep.subr.mxu0 0.0
        %1589 = vmatpush1.msra.mxu0 0.0
        %1590 = vmatprep.subr.mxu0 0.0
        %1591 = vmatpush1.msra.mxu0 0.0
        %1592 = vmatprep.subr.mxu0 0.0
        %1593 = vmatpush1.msra.mxu0 0.0
        %1594 = vmatprep.subr.mxu0 0.0
        %1595 = vmatpush1.msra.mxu0 0.0
        %1596 = vmatprep.subr.mxu0 0.0
        %1597 = vmatpush1.msra.mxu0 0.0
        %1598 = vmatprep.subr.mxu0 0.0
        %1599 = vmatpush1.msra.mxu0 0.0
        %1600 = vmatprep.subr.mxu0 0.0
        %1601 = vmatpush1.msra.mxu0 0.0
        %1602 = vmatprep.subr.mxu0 0.0
        %1603 = vmatpush1.msra.mxu0 0.0
        %1604 = vmatprep.subr.mxu0 0.0
        %1605 = vmatpush1.msra.mxu0 0.0
        %1606 = vmatprep.subr.mxu0 0.0
        %1607 = vmatpush1.msra.mxu0 0.0
        %1608 = vmatprep.mubr.f32.mxu0 0.0
        %1609 = vmatmul.mubr.f32.gmra.mrb[0].mxu0 %v1542
        %v1610 = vpop.f32.mrb[0].mxu0
        %v1611 = vadd.f32 0.0, %v1610
        %v1612 = vpop.f32.mrb[0].mxu0
        %1613 = vdwg.mxu0
        %v1615 = vsel %vm733, %v1611, 0
        %1617 = vmatprep.subr.mxu0 0.0
        %1618 = vmatpush1.msra.mxu0 %v732
        %1619 = vmatprep.subr.mxu0 0.0
        %1620 = vmatpush1.msra.mxu0 0.0
        %1621 = vmatprep.subr.mxu0 0.0
        %1622 = vmatpush1.msra.mxu0 0.0
        %1623 = vmatprep.subr.mxu0 0.0
        %1624 = vmatpush1.msra.mxu0 0.0
        %1625 = vmatprep.subr.mxu0 0.0
        %1626 = vmatpush1.msra.mxu0 0.0
        %1627 = vmatprep.subr.mxu0 0.0
        %1628 = vmatpush1.msra.mxu0 0.0
        %1629 = vmatprep.subr.mxu0 0.0
        %1630 = vmatpush1.msra.mxu0 0.0
        %1631 = vmatprep.subr.mxu0 0.0
        %1632 = vmatpush1.msra.mxu0 0.0
        %1633 = vmatprep.subr.mxu0 0.0
        %1634 = vmatpush1.msra.mxu0 0.0
        %1635 = vmatprep.subr.mxu0 0.0
        %1636 = vmatpush1.msra.mxu0 0.0
        %1637 = vmatprep.subr.mxu0 0.0
        %1638 = vmatpush1.msra.mxu0 0.0
        %1639 = vmatprep.subr.mxu0 0.0
        %1640 = vmatpush1.msra.mxu0 0.0
        %1641 = vmatprep.subr.mxu0 0.0
        %1642 = vmatpush1.msra.mxu0 0.0
        %1643 = vmatprep.subr.mxu0 0.0
        %1644 = vmatpush1.msra.mxu0 0.0
        %1645 = vmatprep.subr.mxu0 0.0
        %1646 = vmatpush1.msra.mxu0 0.0
        %1647 = vmatprep.subr.mxu0 0.0
        %1648 = vmatpush1.msra.mxu0 0.0
        %1649 = vmatprep.subr.mxu0 0.0
        %1650 = vmatpush1.msra.mxu0 0.0
        %1651 = vmatprep.subr.mxu0 0.0
        %1652 = vmatpush1.msra.mxu0 0.0
        %1653 = vmatprep.subr.mxu0 0.0
        %1654 = vmatpush1.msra.mxu0 0.0
        %1655 = vmatprep.subr.mxu0 0.0
        %1656 = vmatpush1.msra.mxu0 0.0
        %1657 = vmatprep.subr.mxu0 0.0
        %1658 = vmatpush1.msra.mxu0 0.0
        %1659 = vmatprep.subr.mxu0 0.0
        %1660 = vmatpush1.msra.mxu0 0.0
        %1661 = vmatprep.subr.mxu0 0.0
        %1662 = vmatpush1.msra.mxu0 0.0
        %1663 = vmatprep.subr.mxu0 0.0
        %1664 = vmatpush1.msra.mxu0 0.0
        %1665 = vmatprep.subr.mxu0 0.0
        %1666 = vmatpush1.msra.mxu0 0.0
        %1667 = vmatprep.subr.mxu0 0.0
        %1668 = vmatpush1.msra.mxu0 0.0
        %1669 = vmatprep.subr.mxu0 0.0
        %1670 = vmatpush1.msra.mxu0 0.0
        %1671 = vmatprep.subr.mxu0 0.0
        %1672 = vmatpush1.msra.mxu0 0.0
        %1673 = vmatprep.subr.mxu0 0.0
        %1674 = vmatpush1.msra.mxu0 0.0
        %1675 = vmatprep.subr.mxu0 0.0
        %1676 = vmatpush1.msra.mxu0 0.0
        %1677 = vmatprep.subr.mxu0 0.0
        %1678 = vmatpush1.msra.mxu0 0.0
        %1679 = vmatprep.subr.mxu0 0.0
        %1680 = vmatpush1.msra.mxu0 0.0
        %1681 = vmatprep.mubr.f32.mxu0 0.0
        %1682 = vmatmul.mubr.f32.gmra.mrb[0].mxu0 %v1615
        %v1683 = vpop.f32.mrb[0].mxu0
        %v1684 = vadd.f32 0.0, %v1683
        %v1685 = vpop.f32.mrb[0].mxu0
        %1686 = vdwg.mxu0
        %v1687 = vadd.f32 %v1447, %v1684
        %v1688 = vadd.f32 %v1687, %v494
        %v1689 = vsel %vm501, %v1688, 0.0
        %1690 = vadd.xlane.f32.xlu0 %v1689
        %v1691 = vpop.xlane.xlu0 %1690
        %v1692 = vrcp.pop 32.0
        %v1693 = vmul.f32 %v1691, %v1692
        %v1694 = vsub.f32 %v1688, %v1693
        %v1695 = vmul.f32 %v1694, %v1694
        %v1696 = vsel %vm501, %v1695, 0.0
        %1697 = vadd.xlane.f32.xlu0 %v1696
        %v1698 = vpop.xlane.xlu0 %1697
        %v1699 = vmul.f32 %v1698, %v1692
        %v1700 = vadd.f32 %v1699, 1e-05
        %v1701 = vrsqrt.pop %v1700
        %v1702 = vmul.f32 %v1694, %v1701
        %v1703 = vld [vmem:[%s7] sm:$0x1]
        %v1705 = vlaneseq
        %v1706 = vshrl.u32 %v1705, 7
        %v1707 = vsub.s32 0, %v1706
        %v1708 = vrot.slane %v1703, %v1707
        %v1710 = vmul.f32 %v1702, %v1708
        %v1711 = vld [vmem:[%s8] sm:$0x1]
        %v1713 = vlaneseq
        %v1714 = vshrl.u32 %v1713, 7
        %v1715 = vsub.s32 0, %v1714
        %v1716 = vrot.slane %v1711, %v1715
        %v1718 = vadd.f32 %v1710, %v1716
        %1719 = vst.msk [vmem:[%s493] sm:$0xff] %vm501, %v1718
        %s1720 = sand.u32 %s259, 1
        %s1721 = scalar_lea.sflag [#allocation4], %s1720
        %s1722 = sand.u32 %s259, 1
        %s1723 = smul.addr %s1722, 8
        %s1724 = scalar_lea.vmem [#allocation14], %s1723
        // Predicated region
        $region85: #{tpu_custom_call.1} parent=55 // pred_check
          %p1725 = pneg %p269
        $region86: #{tpu_custom_call.1} parent=55 // pred_check_branch
          %1727 = sbr.rel (%p1725) target = $region88
        $region87: #{tpu_custom_call.1} parent=55 // pred_region
          %s1729 = ssub.s32 128, 128
          %1730 = vsyncadd %s1721, %s1729
          %s1731 = sadd.s32 %s36, %s35
          %s1732 = smul.addr %s1731, 128
          %s1733 = scalar_lea.hbm %s9, %s1732
          %s1735 = sshll.u32 %s1724, 4
          %s1736 = int_to_ptr.vmem [resolvable:$true] %s1735
          %1738 = dma.vmem_to_hbm [thread:$0]  %s1736, 128, %s1733, %s1721
        $region88: #{tpu_custom_call.1} parent=55 // pred_fallthru
          _
      $region56: #{tpu_custom_call.1} parent=5 // pred_fallthru
        _
      %p1739 = scmp.le.s32.totalorder 2, %s26
      // Predicated region
      $region89: #{tpu_custom_call.1} parent=5 // pred_check
        %p1740 = pneg %p1739
      $region90: #{tpu_custom_call.1} parent=5 // pred_check_branch
        %1742 = sbr.rel (%p1740) target = $region92
      $region91: #{tpu_custom_call.1} parent=5 // pred_region
        %s1743 = ssub.s32 %s26, 2
        // Predicated region
        $region93: #{tpu_custom_call.1} parent=91 // pred_check
          %p1744 = pneg %p275
        $region94: #{tpu_custom_call.1} parent=91 // pred_check_branch
          %1746 = sbr.rel (%p1744) target = $region96
        $region95: #{tpu_custom_call.1} parent=91 // pred_region
          %s1747 = sand.u32 %s260, 1
          %s1748 = scalar_lea.sflag [#allocation4], %s1747
          %s1749 = sand.u32 %s260, 1
          %s1750 = smul.addr %s1749, 8
          %s1751 = scalar_lea.vmem [#allocation14], %s1750
          %1752 = dma.done %s1748, 128
        $region96: #{tpu_custom_call.1} parent=91 // pred_fallthru
          _
      $region92: #{tpu_custom_call.1} parent=5 // pred_fallthru
        _
    $region6: #{tpu_custom_call.1} parent=1 // loop_footer
      %s30 = sadd.s32 1, %s26
    $region7: #{tpu_custom_call.1} parent=1 // loop_footer_branch
      %25 = sbr.rel target = $region3
    $region8: #{tpu_custom_call.1} parent=1 // loop_exit
      _
    %1753 = vsyncpa [#allocation3], 1
    %s1754 = scalar_lea.sflag [#allocation3], 1
    %1755 = vsyncpa %s1754, 1
    %1756 = vsyncpa [#allocation6], 1
    %s1757 = scalar_lea.sflag [#allocation6], 1
    %1758 = vsyncpa %s1757, 1
    %1759 = vsyncpa [#allocation9], 1
    %1760 = vsyncpa [#allocation12], 1
    %1761 = vsyncpa [#allocation4], 1
    %s1762 = scalar_lea.sflag [#allocation4], 1
    %1763 = vsyncpa %s1762, 1

</llo_original>
